<compile_context>
chip_gen: v7x
topology: tpu7x:2x2x1
jax: 0.10.0
libtpu: 0.0.40
codegen_flags: <defaults>
</compile_context>

<pallas_src>
import functools

import jax
import jax.numpy as jnp
from jax.experimental import pallas as pl
from jax.experimental.pallas import tpu as pltpu


# ----------------------------------------------------------------------------
# Tiling helpers
# ----------------------------------------------------------------------------
_TK = 1024      # inner K tile (keeps 2-deep pipelines inside v7x's 64 MiB VMEM)
_TM_CAP = 2048  # measured: >=512-wide M tiles reach ~85% of HBM roofline


def _round_up(x, m):
    return (x + m - 1) // m * m


def _derive_vmem_limit():
    """Generation-aware scoped-VMEM limit (~3/4 of physical), safe fallback."""
    try:
        cap = int(pltpu.get_tpu_info().vmem_capacity_bytes)
        return max(32 << 20, min((cap * 3) // 4, 112 << 20))
    except Exception:
        return 32 << 20


_VMEM_LIMIT = _derive_vmem_limit()


def _k_alloc(k_true):
    """Padded K allocation and K tile."""
    k_pad = _round_up(k_true, 128)
    if k_pad <= _TK:
        return k_pad, k_pad
    return _round_up(k_pad, _TK), _TK


def _m_tiling(m, tk, n_pad, out_bytes, vmem_limit):
    """Largest M tile (multiple of 8, <= _TM_CAP) whose double-buffered tiles fit."""
    m8 = _round_up(m, 8)
    per_row = 2 * tk * 2 + 2 * n_pad * out_bytes + n_pad * 4   # patches + out + acc
    fixed = 2 * tk * n_pad * 2 + (2 << 20)                      # weights + headroom
    budget = max(vmem_limit - fixed, 1 << 20)
    tm = max(8, min(_TM_CAP, m8, (budget // per_row) // 8 * 8))
    m_pad = _round_up(m8, tm)
    return tm, m_pad, m_pad // tm


# ----------------------------------------------------------------------------
# Pallas kernels
# ----------------------------------------------------------------------------
def _make_plain_kernel(act):
    """K-tiled matmul + activation (no batch-norm). act in {'leaky','sigmoid'}."""

    def kernel(p_ref, w_ref, o_ref, acc_ref):
        kk = pl.program_id(1)

        @pl.when(kk == 0)
        def _():
            acc_ref[...] = jnp.zeros_like(acc_ref)

        acc_ref[...] += jnp.dot(p_ref[...], w_ref[...],
                                preferred_element_type=jnp.float32)

        @pl.when(kk == pl.num_programs(1) - 1)
        def _():
            acc = acc_ref[...]
            if act == "leaky":
                acc = jnp.where(acc > 0, acc, 0.2 * acc)
            else:  # exact sigmoid (tiny classifier tile; exp hits the EUP slot)
                acc = 1.0 / (1.0 + jnp.exp(-acc))
            o_ref[...] = acc.astype(o_ref.dtype)

    return kernel


def _bn_matmul_stats_kernel(p_ref, w_ref, y_ref, stats_ref, acc_ref):
    """K-tiled matmul; emits raw f32 acc tile + per-tile (sum, sumsq) partials.

    No matmul recompute: the apply pass is a separate elementwise kernel that
    reads y back.  Per-tile partial stats make the M axis safely "parallel"
    (v7x megacore); they are combined by a tiny JAX reduce between the calls.
    Zero-padded M rows contribute nothing (acc == 0) and the true M is used as
    the divisor outside, so batch statistics are exact.
    """
    kk = pl.program_id(1)

    @pl.when(kk == 0)
    def _():
        acc_ref[...] = jnp.zeros_like(acc_ref)

    acc_ref[...] += jnp.dot(p_ref[...], w_ref[...],
                            preferred_element_type=jnp.float32)

    @pl.when(kk == pl.num_programs(1) - 1)
    def _():
        acc = acc_ref[...]
        y_ref[...] = acc
        stats_ref[...] = jnp.zeros_like(stats_ref)
        stats_ref[0:1, :] = jnp.sum(acc, axis=0, keepdims=True)
        stats_ref[1:2, :] = jnp.sum(acc * acc, axis=0, keepdims=True)


def _bn_apply_kernel(y_ref, scale_ref, shift_ref, o_ref):
    """Elementwise BatchNorm(scale, shift) + LeakyReLU(0.2)."""
    y = y_ref[...] * scale_ref[...] + shift_ref[...]
    o_ref[...] = jnp.where(y > 0, y, 0.2 * y).astype(o_ref.dtype)


# ----------------------------------------------------------------------------
# pallas_call wrappers
# ----------------------------------------------------------------------------
def _conv_plain(patches, w_mat, act, tm, n_m, tk, n_k,
                m_true, k_true, n_true, out_dtype):
    m_pad, _ = patches.shape
    n_pad = w_mat.shape[1]
    out_bytes = jnp.dtype(out_dtype).itemsize
    return pl.pallas_call(
        _make_plain_kernel(act),
        out_shape=jax.ShapeDtypeStruct((m_pad, n_pad), out_dtype),
        grid_spec=pltpu.PrefetchScalarGridSpec(
            num_scalar_prefetch=0,
            grid=(n_m, n_k),
            in_specs=[
                pl.BlockSpec((tm, tk), lambda i, kk: (i, kk)),
                pl.BlockSpec((tk, n_pad), lambda i, kk: (kk, 0)),
            ],
            out_specs=pl.BlockSpec((tm, n_pad), lambda i, kk: (i, 0)),
            scratch_shapes=[pltpu.VMEM((tm, n_pad), jnp.float32)],
        ),
        compiler_params=pltpu.CompilerParams(
            dimension_semantics=("parallel", "arbitrary"),
            vmem_limit_bytes=_VMEM_LIMIT,
        ),
        cost_estimate=pl.CostEstimate(
            flops=2 * m_true * k_true * n_true,
            transcendentals=(m_true * n_true) if act == "sigmoid" else 0,
            bytes_accessed=patches.size * 2 + w_mat.size * 2
            + m_pad * n_pad * out_bytes,
        ),
    )(patches, w_mat)


def _conv_bn_matmul(patches, w_mat, tm, n_m, tk, n_k, m_true, k_true, n_true):
    m_pad, _ = patches.shape
    n_pad = w_mat.shape[1]
    return pl.pallas_call(
        _bn_matmul_stats_kernel,
        out_shape=(
            jax.ShapeDtypeStruct((m_pad, n_pad), jnp.float32),   # raw acc
            jax.ShapeDtypeStruct((n_m * 8, n_pad), jnp.float32),  # per-tile stats
        ),
        grid_spec=pltpu.PrefetchScalarGridSpec(
            num_scalar_prefetch=0,
            grid=(n_m, n_k),
            in_specs=[
                pl.BlockSpec((tm, tk), lambda i, kk: (i, kk)),
                pl.BlockSpec((tk, n_pad), lambda i, kk: (kk, 0)),
            ],
            out_specs=[
                pl.BlockSpec((tm, n_pad), lambda i, kk: (i, 0)),
                pl.BlockSpec((8, n_pad), lambda i, kk: (i, 0)),
            ],
            scratch_shapes=[pltpu.VMEM((tm, n_pad), jnp.float32)],
        ),
        compiler_params=pltpu.CompilerParams(
            dimension_semantics=("parallel", "arbitrary"),
            vmem_limit_bytes=_VMEM_LIMIT,
        ),
        cost_estimate=pl.CostEstimate(
            flops=2 * m_true * k_true * n_true,
            transcendentals=0,
            bytes_accessed=patches.size * 2 + w_mat.size * 2 + m_pad * n_pad * 4,
        ),
    )(patches, w_mat)


def _bn_apply(y, scale, shift, tm, n_m, out_dtype):
    m_pad, n_pad = y.shape
    return pl.pallas_call(
        _bn_apply_kernel,
        out_shape=jax.ShapeDtypeStruct((m_pad, n_pad), out_dtype),
        grid_spec=pltpu.PrefetchScalarGridSpec(
            num_scalar_prefetch=0,
            grid=(n_m,),
            in_specs=[
                pl.BlockSpec((tm, n_pad), lambda i: (i, 0)),
                pl.BlockSpec((1, n_pad), lambda i: (0, 0)),
                pl.BlockSpec((1, n_pad), lambda i: (0, 0)),
            ],
            out_specs=pl.BlockSpec((tm, n_pad), lambda i: (i, 0)),
        ),
        compiler_params=pltpu.CompilerParams(
            dimension_semantics=("parallel",),
            vmem_limit_bytes=_VMEM_LIMIT,
        ),
    )(y, scale, shift)


# ----------------------------------------------------------------------------
# Glue: im2col (XLA), layer configuration, params, forward
# ----------------------------------------------------------------------------
def im2col_nhwc(x, kh, kw, stride, pad, k_alloc, m_pad):
    """NHWC -> zero-padded bf16 (m_pad, k_alloc) patches; K ordered (kh, kw, C)."""
    # TODO(synk): hoist the window extraction into the Pallas kernel (read an
    # NHWC row slab via BlockSpec and assemble patch tiles in VMEM) to remove
    # the kh*kw HBM read amplification; bf16 cast here is the stopgap.
    x = x.astype(jnp.bfloat16)
    B, H, W, C = x.shape
    xp = jnp.pad(x, ((0, 0), (pad, pad), (pad, pad), (0, 0)))
    OH = (H + 2 * pad - kh) // stride + 1
    OW = (W + 2 * pad - kw) // stride + 1
    taps = []
    for i in range(kh):
        for j in range(kw):
            taps.append(xp[:, i:i + stride * OH:stride, j:j + stride * OW:stride, :])
    patches = jnp.stack(taps, axis=3).reshape(B * OH * OW, kh * kw * C)
    m, k = patches.shape
    return jnp.pad(patches, ((0, m_pad - m), (0, k_alloc - k)))


def conv_layer_nhwc(x, cfg, prm, out_dtype):
    """One fused conv layer in padded NHWC; output keeps n_pad channels."""
    in_c, in_width, out_c, n_pad, k, s, p, mode = cfg
    w_mat, gamma, beta = prm
    B, H, W, _ = x.shape
    OH = (H + 2 * p - k) // s + 1
    OW = (W + 2 * p - k) // s + 1
    M = B * OH * OW
    K = k * k * in_width
    k_alloc, tk = _k_alloc(K)
    n_k = k_alloc // tk
    vmem_out_bytes = 4 if mode == "bn_leaky" else jnp.dtype(out_dtype).itemsize
    tm, m_pad, n_m = _m_tiling(M, tk, n_pad, vmem_out_bytes, _VMEM_LIMIT)

    patches = im2col_nhwc(x, k, k, s, p, k_alloc, m_pad)

    if mode == "bn_leaky":
        y, stats = _conv_bn_matmul(patches, w_mat, tm, n_m, tk, n_k,
                                   M, in_c * k * k, out_c)
        stats = stats.reshape(n_m, 8, n_pad)
        ssum = jnp.sum(stats[:, 0, :], axis=0, keepdims=True)
        ssq = jnp.sum(stats[:, 1, :], axis=0, keepdims=True)
        mean = ssum / M
        var = jnp.maximum(ssq / M - mean * mean, 0.0)   # biased var, like PyTorch
        scale = gamma * jax.lax.rsqrt(var + 1e-5)
        shift = beta - mean * scale
        out = _bn_apply(y, scale, shift, tm, n_m, out_dtype)
    else:
        out = _conv_plain(patches, w_mat, mode, tm, n_m, tk, n_k,
                          M, in_c * k * k, out_c, out_dtype)
    return out[:M].reshape(B, OH, OW, n_pad)


def build_netd_config(im_size, num_channels, ngf):
    """Replicates Encoder(im_size, 1, num_channels, ngf, ngpu, 0) layer list.

    Layer tuple: (in_c, in_width(padded prev channels), out_c, n_pad, k, s, p, mode).
    """
    # TODO(synk): n_extra_layers > 0 (extra 3x3 conv+BN+LeakyReLU blocks) not
    # instantiated; config uses extralayers=0 as in the reference opt.
    def mk(in_c, in_width, out_c, k, s, p, mode):
        return (in_c, in_width, out_c, _round_up(out_c, 128), k, s, p, mode)

    feature_layers = [mk(num_channels, num_channels, ngf, 4, 2, 1, "leaky")]
    csize, cndf = im_size // 2, ngf
    while csize > 4:
        feature_layers.append(mk(cndf, feature_layers[-1][3], cndf * 2, 4, 2, 1, "bn_leaky"))
        cndf *= 2
        csize //= 2
    classifier_layer = mk(cndf, feature_layers[-1][3], 1, 4, 1, 0, "sigmoid")
    return feature_layers, classifier_layer


def _weight_matrix(w, in_width, k_alloc, n_pad):
    """(OutC,InC,KH,KW) -> bf16 (k_alloc, n_pad) matmul weight with padded InC rows."""
    out_c, in_c, kh, kw = w.shape
    wt = jnp.transpose(w, (2, 3, 1, 0))                           # (KH,KW,InC,OutC)
    wt = jnp.pad(wt, ((0, 0), (0, 0), (0, in_width - in_c), (0, n_pad - out_c)))
    wm = wt.reshape(kh * kw * in_width, n_pad)
    wm = jnp.pad(wm, ((0, k_alloc - kh * kw * in_width), (0, 0)))
    return wm.astype(jnp.bfloat16)


def init_params(key, layers):
    """N(0, 0.02) conv weights; BN gamma=1 / beta=0 (f32, lane-padded)."""
    params = []
    for (in_c, in_width, out_c, n_pad, k, _s, _p, mode) in layers:
        key, sub = jax.random.split(key)
        w = 0.02 * jax.random.normal(sub, (out_c, in_c, k, k), dtype=jnp.float32)
        k_alloc, _tk = _k_alloc(k * k * in_width)
        w_mat = _weight_matrix(w, in_width, k_alloc, n_pad)
        if mode == "bn_leaky":
            gamma = jnp.ones((1, n_pad), dtype=jnp.float32)
            beta = jnp.zeros((1, n_pad), dtype=jnp.float32)
        else:
            gamma = beta = None
        params.append((w_mat, gamma, beta))
    return params, key


def netd_forward(x, feature_layers, classifier_layer, feat_params, cls_params):
    """NetD.forward: returns (classifier, features) matching the PyTorch module."""
    # TODO(synk): for tiny configs (M <= 128 per layer) the whole forward could
    # be fused into a single VMEM-resident pallas_call to remove per-layer
    # launches and all inter-layer HBM traffic.
    h = jnp.transpose(x, (0, 2, 3, 1))  # NCHW -> NHWC once at the boundary
    n_feat = len(feature_layers)
    for idx, (cfg, prm) in enumerate(zip(feature_layers, feat_params)):
        # Hidden activations stay bf16; the returned features stay f32.
        out_dtype = jnp.float32 if idx == n_feat - 1 else jnp.bfloat16
        h = conv_layer_nhwc(h, cfg, prm, out_dtype)
    out_c_last = feature_layers[-1][2]
    features = jnp.transpose(h[..., :out_c_last], (0, 3, 1, 2))  # NCHW, as PyTorch
    cls = conv_layer_nhwc(h, classifier_layer, cls_params, jnp.float32)
    classifier = cls[..., :classifier_layer[2]].reshape(-1)      # (B,)
    return classifier, features


if __name__ == "__main__":
    # Small, module-consistent opt: im_size=16, num_channels=3, ngf=8,
    # extralayers=0, ngpu=1, latent_size fixed to 1 by NetD.
    IM_SIZE, NC, NGF, BATCH = 16, 3, 8, 2

    key = jax.random.PRNGKey(0)
    key, xkey = jax.random.split(key)
    x = jax.random.normal(xkey, (BATCH, NC, IM_SIZE, IM_SIZE), dtype=jnp.float32)

    feature_layers, classifier_layer = build_netd_config(IM_SIZE, NC, NGF)
    feat_params, key = init_params(key, feature_layers)
    cls_params_list, key = init_params(key, [classifier_layer])
    cls_params = cls_params_list[0]

    fwd = jax.jit(
        functools.partial(
            netd_forward,
            feature_layers=feature_layers,
            classifier_layer=classifier_layer,
            feat_params=feat_params,
            cls_params=cls_params,
        )
    )
    classifier, features = fwd(x)
    jax.block_until_ready((classifier, features))

    assert classifier.shape == (BATCH,), classifier.shape
    assert features.shape == (BATCH, NGF * 2, 4, 4), features.shape
    assert bool(jnp.all(jnp.isfinite(features)))
    assert bool(jnp.all((classifier >= 0.0) & (classifier <= 1.0)))
    print("KERNEL_OK")
</pallas_src>

<mosaic_0001>
module attributes {stable_mosaic.version = 11 : i64} {
  func.func @kernel(%arg0: i32, %arg1: i32, %arg2: memref<128x128xbf16, #tpu.memory_space<vmem>>, %arg3: memref<128x128xbf16, #tpu.memory_space<vmem>>, %arg4: memref<128x128xbf16, #tpu.memory_space<vmem>>, %arg5: memref<128x128xf32, #tpu.memory_space<vmem>>) attributes {dimension_semantics = [#tpu.dimension_semantics<parallel>, #tpu.dimension_semantics<arbitrary>], iteration_bounds = array<i64: 1, 1>, scalar_prefetch = 0 : i64, scratch_operands = 1 : i64, tpu.core_type = #tpu.core_type<tc>, window_params = [{transform_indices = @transform_0, window_bounds = array<i64: 128, 128>}, {transform_indices = @transform_1, window_bounds = array<i64: 128, 128>}, {transform_indices = @transform_2, window_bounds = array<i64: 128, 128>}]} {
    %c0_i32 = arith.constant 0 : i32
    %0 = arith.cmpi eq, %arg1, %c0_i32 : i32
    %1 = arith.extui %0 : i1 to i32
    %c0_i32_0 = arith.constant 0 : i32
    %2 = arith.cmpi ne, %1, %c0_i32_0 : i32
    scf.if %2 {
      %cst_10 = arith.constant 0.000000e+00 : f32
      %12 = vector.broadcast %cst_10 : f32 to vector<128x128xf32>
      %c0_11 = arith.constant 0 : index
      %c0_12 = arith.constant 0 : index
      %13 = vector.load %arg5[%c0_11, %c0_12] : memref<128x128xf32, #tpu.memory_space<vmem>>, vector<128x128xf32>
      tpu.vector_store %arg5[%c0_11, %c0_12], %12 {strides = array<i32>} : memref<128x128xf32, #tpu.memory_space<vmem>>, vector<128x128xf32>,
    } else {
    }
    %c0 = arith.constant 0 : index
    %c0_1 = arith.constant 0 : index
    %3 = vector.load %arg5[%c0, %c0_1] : memref<128x128xf32, #tpu.memory_space<vmem>>, vector<128x128xf32>
    %c0_2 = arith.constant 0 : index
    %c0_3 = arith.constant 0 : index
    %4 = vector.load %arg2[%c0_2, %c0_3] : memref<128x128xbf16, #tpu.memory_space<vmem>>, vector<128x128xbf16>
    %c0_4 = arith.constant 0 : index
    %c0_5 = arith.constant 0 : index
    %5 = vector.load %arg3[%c0_4, %c0_5] : memref<128x128xbf16, #tpu.memory_space<vmem>>, vector<128x128xbf16>
    %cst = arith.constant dense<0.000000e+00> : vector<128x128xf32>
    %6 = tpu.matmul %4, %5, %cst {dimension_numbers = #tpu.dot_dimension_numbers<[1], [0], [0], [1], [0, 0, 1, 1], [], []>} : vector<128x128xbf16>, vector<128x128xbf16>, vector<128x128xf32> -> vector<128x128xf32>
    %7 = arith.addf %3, %6 : vector<128x128xf32>
    %c0_6 = arith.constant 0 : index
    %c0_7 = arith.constant 0 : index
    %8 = vector.load %arg5[%c0_6, %c0_7] : memref<128x128xf32, #tpu.memory_space<vmem>>, vector<128x128xf32>
    tpu.vector_store %arg5[%c0_6, %c0_7], %7 {strides = array<i32>} : memref<128x128xf32, #tpu.memory_space<vmem>>, vector<128x128xf32>,
    %c0_i32_8 = arith.constant 0 : i32
    %9 = arith.cmpi eq, %arg1, %c0_i32_8 : i32
    %10 = arith.extui %9 : i1 to i32
    %c0_i32_9 = arith.constant 0 : i32
    %11 = arith.cmpi ne, %10, %c0_i32_9 : i32
    scf.if %11 {
      %c0_10 = arith.constant 0 : index
      %c0_11 = arith.constant 0 : index
      %12 = vector.load %arg5[%c0_10, %c0_11] : memref<128x128xf32, #tpu.memory_space<vmem>>, vector<128x128xf32>
      %cst_12 = arith.constant 0.000000e+00 : f32
      %13 = vector.broadcast %cst_12 : f32 to vector<128x128xf32>
      %14 = arith.cmpf ogt, %12, %13 : vector<128x128xf32>
      %cst_13 = arith.constant 2.000000e-01 : f32
      %15 = vector.broadcast %cst_13 : f32 to vector<128x128xf32>
      %16 = arith.mulf %15, %12 : vector<128x128xf32>
      %17 = arith.select %14, %12, %16 : vector<128x128xi1>, vector<128x128xf32>
      %18 = arith.truncf %17 : vector<128x128xf32> to vector<128x128xbf16>
      %c0_14 = arith.constant 0 : index
      %c0_15 = arith.constant 0 : index
      %19 = vector.load %arg4[%c0_14, %c0_15] : memref<128x128xbf16, #tpu.memory_space<vmem>>, vector<128x128xbf16>
      tpu.vector_store %arg4[%c0_14, %c0_15], %18 {strides = array<i32>} : memref<128x128xbf16, #tpu.memory_space<vmem>>, vector<128x128xbf16>,
    } else {
    }
    return
  }
  func.func @transform_0(%arg0: i32, %arg1: i32) -> (i32, i32) {
    %c0_i32 = arith.constant 0 : i32
    return %arg0, %arg1 : i32, i32
  }
  func.func @transform_1(%arg0: i32, %arg1: i32) -> (i32, i32) {
    %c0_i32 = arith.constant 0 : i32
    %c0_i32_0 = arith.constant 0 : i32
    return %arg1, %c0_i32 : i32, i32
  }
  func.func @transform_2(%arg0: i32, %arg1: i32) -> (i32, i32) {
    %c0_i32 = arith.constant 0 : i32
    %c0_i32_0 = arith.constant 0 : i32
    return %arg0, %c0_i32 : i32, i32
  }
}

module attributes {stable_mosaic.version = 11 : i64} {
  func.func @_bn_apply_kernel(%arg0: i32, %arg1: memref<32x128xf32, #tpu.memory_space<vmem>>, %arg2: memref<1x128xf32, #tpu.memory_space<vmem>>, %arg3: memref<1x128xf32, #tpu.memory_space<vmem>>, %arg4: memref<32x128xf32, #tpu.memory_space<vmem>>) attributes {dimension_semantics = [#tpu.dimension_semantics<parallel>], iteration_bounds = array<i64: 1>, scalar_prefetch = 0 : i64, scratch_operands = 0 : i64, tpu.core_type = #tpu.core_type<tc>, window_params = [{transform_indices = @transform_0, window_bounds = array<i64: 32, 128>}, {pipeline_mode = #tpu.pipeline_mode<synchronous>, transform_indices = @transform_1, window_bounds = array<i64: 1, 128>}, {pipeline_mode = #tpu.pipeline_mode<synchronous>, transform_indices = @transform_2, window_bounds = array<i64: 1, 128>}, {transform_indices = @transform_3, window_bounds = array<i64: 32, 128>}]} {
    %c0 = arith.constant 0 : index
    %c0_0 = arith.constant 0 : index
    %0 = vector.load %arg1[%c0, %c0_0] : memref<32x128xf32, #tpu.memory_space<vmem>>, vector<32x128xf32>
    %c0_1 = arith.constant 0 : index
    %c0_2 = arith.constant 0 : index
    %1 = vector.load %arg2[%c0_1, %c0_2] : memref<1x128xf32, #tpu.memory_space<vmem>>, vector<1x128xf32>
    %2 = vector.broadcast %1 : vector<1x128xf32> to vector<32x128xf32>
    %3 = arith.mulf %0, %2 : vector<32x128xf32>
    %c0_3 = arith.constant 0 : index
    %c0_4 = arith.constant 0 : index
    %4 = vector.load %arg3[%c0_3, %c0_4] : memref<1x128xf32, #tpu.memory_space<vmem>>, vector<1x128xf32>
    %5 = vector.broadcast %4 : vector<1x128xf32> to vector<32x128xf32>
    %6 = arith.addf %3, %5 : vector<32x128xf32>
    %cst = arith.constant 0.000000e+00 : f32
    %7 = vector.broadcast %cst : f32 to vector<32x128xf32>
    %8 = arith.cmpf ogt, %6, %7 : vector<32x128xf32>
    %cst_5 = arith.constant 2.000000e-01 : f32
    %9 = vector.broadcast %cst_5 : f32 to vector<32x128xf32>
    %10 = arith.mulf %9, %6 : vector<32x128xf32>
    %11 = arith.select %8, %6, %10 : vector<32x128xi1>, vector<32x128xf32>
    %c0_6 = arith.constant 0 : index
    %c0_7 = arith.constant 0 : index
    %12 = vector.load %arg4[%c0_6, %c0_7] : memref<32x128xf32, #tpu.memory_space<vmem>>, vector<32x128xf32>
    tpu.vector_store %arg4[%c0_6, %c0_7], %11 {strides = array<i32>} : memref<32x128xf32, #tpu.memory_space<vmem>>, vector<32x128xf32>,
    return
  }
  func.func @transform_0(%arg0: i32) -> (i32, i32) {
    %c0_i32 = arith.constant 0 : i32
    %c0_i32_0 = arith.constant 0 : i32
    return %arg0, %c0_i32 : i32, i32
  }
  func.func @transform_1(%arg0: i32) -> (i32, i32) {
    %c0_i32 = arith.constant 0 : i32
    %c0_i32_0 = arith.constant 0 : i32
    %c0_i32_1 = arith.constant 0 : i32
    return %c0_i32, %c0_i32_0 : i32, i32
  }
  func.func @transform_2(%arg0: i32) -> (i32, i32) {
    %c0_i32 = arith.constant 0 : i32
    %c0_i32_0 = arith.constant 0 : i32
    %c0_i32_1 = arith.constant 0 : i32
    return %c0_i32, %c0_i32_0 : i32, i32
  }
  func.func @transform_3(%arg0: i32) -> (i32, i32) {
    %c0_i32 = arith.constant 0 : i32
    %c0_i32_0 = arith.constant 0 : i32
    return %arg0, %c0_i32 : i32, i32
  }
}

module attributes {stable_mosaic.version = 11 : i64} {
  func.func @_bn_matmul_stats_kernel(%arg0: i32, %arg1: i32, %arg2: memref<32x1024xbf16, #tpu.memory_space<vmem>>, %arg3: memref<1024x128xbf16, #tpu.memory_space<vmem>>, %arg4: memref<32x128xf32, #tpu.memory_space<vmem>>, %arg5: memref<8x128xf32, #tpu.memory_space<vmem>>, %arg6: memref<32x128xf32, #tpu.memory_space<vmem>>) attributes {dimension_semantics = [#tpu.dimension_semantics<parallel>, #tpu.dimension_semantics<arbitrary>], iteration_bounds = array<i64: 1, 2>, scalar_prefetch = 0 : i64, scratch_operands = 1 : i64, tpu.core_type = #tpu.core_type<tc>, window_params = [{transform_indices = @transform_0, window_bounds = array<i64: 32, 1024>}, {transform_indices = @transform_1, window_bounds = array<i64: 1024, 128>}, {transform_indices = @transform_2, window_bounds = array<i64: 32, 128>}, {transform_indices = @transform_3, window_bounds = array<i64: 8, 128>}]} {
    %c0_i32 = arith.constant 0 : i32
    %0 = arith.cmpi eq, %arg1, %c0_i32 : i32
    %1 = arith.extui %0 : i1 to i32
    %c0_i32_0 = arith.constant 0 : i32
    %2 = arith.cmpi ne, %1, %c0_i32_0 : i32
    scf.if %2 {
      %cst_9 = arith.constant 0.000000e+00 : f32
      %12 = vector.broadcast %cst_9 : f32 to vector<32x128xf32>
      %c0_10 = arith.constant 0 : index
      %c0_11 = arith.constant 0 : index
      %13 = vector.load %arg6[%c0_10, %c0_11] : memref<32x128xf32, #tpu.memory_space<vmem>>, vector<32x128xf32>
      tpu.vector_store %arg6[%c0_10, %c0_11], %12 {strides = array<i32>} : memref<32x128xf32, #tpu.memory_space<vmem>>, vector<32x128xf32>,
    } else {
    }
    %c0 = arith.constant 0 : index
    %c0_1 = arith.constant 0 : index
    %3 = vector.load %arg6[%c0, %c0_1] : memref<32x128xf32, #tpu.memory_space<vmem>>, vector<32x128xf32>
    %c0_2 = arith.constant 0 : index
    %c0_3 = arith.constant 0 : index
    %4 = vector.load %arg2[%c0_2, %c0_3] : memref<32x1024xbf16, #tpu.memory_space<vmem>>, vector<32x1024xbf16>
    %c0_4 = arith.constant 0 : index
    %c0_5 = arith.constant 0 : index
    %5 = vector.load %arg3[%c0_4, %c0_5] : memref<1024x128xbf16, #tpu.memory_space<vmem>>, vector<1024x128xbf16>
    %cst = arith.constant dense<0.000000e+00> : vector<32x128xf32>
    %6 = tpu.matmul %4, %5, %cst {dimension_numbers = #tpu.dot_dimension_numbers<[1], [0], [0], [1], [0, 0, 1, 1], [], []>} : vector<32x1024xbf16>, vector<1024x128xbf16>, vector<32x128xf32> -> vector<32x128xf32>
    %7 = arith.addf %3, %6 : vector<32x128xf32>
    %c0_6 = arith.constant 0 : index
    %c0_7 = arith.constant 0 : index
    %8 = vector.load %arg6[%c0_6, %c0_7] : memref<32x128xf32, #tpu.memory_space<vmem>>, vector<32x128xf32>
    tpu.vector_store %arg6[%c0_6, %c0_7], %7 {strides = array<i32>} : memref<32x128xf32, #tpu.memory_space<vmem>>, vector<32x128xf32>,
    %c1_i32 = arith.constant 1 : i32
    %9 = arith.cmpi eq, %arg1, %c1_i32 : i32
    %10 = arith.extui %9 : i1 to i32
    %c0_i32_8 = arith.constant 0 : i32
    %11 = arith.cmpi ne, %10, %c0_i32_8 : i32
    scf.if %11 {
      %c0_9 = arith.constant 0 : index
      %c0_10 = arith.constant 0 : index
      %12 = vector.load %arg6[%c0_9, %c0_10] : memref<32x128xf32, #tpu.memory_space<vmem>>, vector<32x128xf32>
      %c0_11 = arith.constant 0 : index
      %c0_12 = arith.constant 0 : index
      %13 = vector.load %arg4[%c0_11, %c0_12] : memref<32x128xf32, #tpu.memory_space<vmem>>, vector<32x128xf32>
      tpu.vector_store %arg4[%c0_11, %c0_12], %12 {strides = array<i32>} : memref<32x128xf32, #tpu.memory_space<vmem>>, vector<32x128xf32>,
      %cst_13 = arith.constant 0.000000e+00 : f32
      %14 = vector.broadcast %cst_13 : f32 to vector<8x128xf32>
      %c0_14 = arith.constant 0 : index
      %c0_15 = arith.constant 0 : index
      %15 = vector.load %arg5[%c0_14, %c0_15] : memref<8x128xf32, #tpu.memory_space<vmem>>, vector<8x128xf32>
      tpu.vector_store %arg5[%c0_14, %c0_15], %14 {strides = array<i32>} : memref<8x128xf32, #tpu.memory_space<vmem>>, vector<8x128xf32>,
      %cst_16 = arith.constant dense<0.000000e+00> : vector<128xf32>
      %16 = vector.multi_reduction <add>, %12, %cst_16 [0] : vector<32x128xf32> to vector<128xf32>
      %17 = vector.shape_cast %16 : vector<128xf32> to vector<1x128xf32>
      %c0_17 = arith.constant 0 : index
      %c0_18 = arith.constant 0 : index
      %18 = vector.load %arg5[%c0_17, %c0_18] : memref<8x128xf32, #tpu.memory_space<vmem>>, vector<1x128xf32>
      tpu.vector_store %arg5[%c0_17, %c0_18], %17 {strides = array<i32>} : memref<8x128xf32, #tpu.memory_space<vmem>>, vector<1x128xf32>,
      %19 = arith.mulf %12, %12 : vector<32x128xf32>
      %cst_19 = arith.constant dense<0.000000e+00> : vector<128xf32>
      %20 = vector.multi_reduction <add>, %19, %cst_19 [0] : vector<32x128xf32> to vector<128xf32>
      %21 = vector.shape_cast %20 : vector<128xf32> to vector<1x128xf32>
      %c1 = arith.constant 1 : index
      %c0_20 = arith.constant 0 : index
      %22 = vector.load %arg5[%c1, %c0_20] : memref<8x128xf32, #tpu.memory_space<vmem>>, vector<1x128xf32>
      tpu.vector_store %arg5[%c1, %c0_20], %21 {strides = array<i32>} : memref<8x128xf32, #tpu.memory_space<vmem>>, vector<1x128xf32>,
    } else {
    }
    return
  }
  func.func @transform_0(%arg0: i32, %arg1: i32) -> (i32, i32) {
    %c0_i32 = arith.constant 0 : i32
    return %arg0, %arg1 : i32, i32
  }
  func.func @transform_1(%arg0: i32, %arg1: i32) -> (i32, i32) {
    %c0_i32 = arith.constant 0 : i32
    %c0_i32_0 = arith.constant 0 : i32
    return %arg1, %c0_i32 : i32, i32
  }
  func.func @transform_2(%arg0: i32, %arg1: i32) -> (i32, i32) {
    %c0_i32 = arith.constant 0 : i32
    %c0_i32_0 = arith.constant 0 : i32
    return %arg0, %c0_i32 : i32, i32
  }
  func.func @transform_3(%arg0: i32, %arg1: i32) -> (i32, i32) {
    %c0_i32 = arith.constant 0 : i32
    %c0_i32_0 = arith.constant 0 : i32
    return %arg0, %c0_i32 : i32, i32
  }
}

module attributes {stable_mosaic.version = 11 : i64} {
  func.func @kernel(%arg0: i32, %arg1: i32, %arg2: memref<8x1024xbf16, #tpu.memory_space<vmem>>, %arg3: memref<1024x128xbf16, #tpu.memory_space<vmem>>, %arg4: memref<8x128xf32, #tpu.memory_space<vmem>>, %arg5: memref<8x128xf32, #tpu.memory_space<vmem>>) attributes {dimension_semantics = [#tpu.dimension_semantics<parallel>, #tpu.dimension_semantics<arbitrary>], iteration_bounds = array<i64: 1, 2>, scalar_prefetch = 0 : i64, scratch_operands = 1 : i64, tpu.core_type = #tpu.core_type<tc>, window_params = [{transform_indices = @transform_0, window_bounds = array<i64: 8, 1024>}, {transform_indices = @transform_1, window_bounds = array<i64: 1024, 128>}, {transform_indices = @transform_2, window_bounds = array<i64: 8, 128>}]} {
    %c0_i32 = arith.constant 0 : i32
    %0 = arith.cmpi eq, %arg1, %c0_i32 : i32
    %1 = arith.extui %0 : i1 to i32
    %c0_i32_0 = arith.constant 0 : i32
    %2 = arith.cmpi ne, %1, %c0_i32_0 : i32
    scf.if %2 {
      %cst_9 = arith.constant 0.000000e+00 : f32
      %12 = vector.broadcast %cst_9 : f32 to vector<8x128xf32>
      %c0_10 = arith.constant 0 : index
      %c0_11 = arith.constant 0 : index
      %13 = vector.load %arg5[%c0_10, %c0_11] : memref<8x128xf32, #tpu.memory_space<vmem>>, vector<8x128xf32>
      tpu.vector_store %arg5[%c0_10, %c0_11], %12 {strides = array<i32>} : memref<8x128xf32, #tpu.memory_space<vmem>>, vector<8x128xf32>,
    } else {
    }
    %c0 = arith.constant 0 : index
    %c0_1 = arith.constant 0 : index
    %3 = vector.load %arg5[%c0, %c0_1] : memref<8x128xf32, #tpu.memory_space<vmem>>, vector<8x128xf32>
    %c0_2 = arith.constant 0 : index
    %c0_3 = arith.constant 0 : index
    %4 = vector.load %arg2[%c0_2, %c0_3] : memref<8x1024xbf16, #tpu.memory_space<vmem>>, vector<8x1024xbf16>
    %c0_4 = arith.constant 0 : index
    %c0_5 = arith.constant 0 : index
    %5 = vector.load %arg3[%c0_4, %c0_5] : memref<1024x128xbf16, #tpu.memory_space<vmem>>, vector<1024x128xbf16>
    %cst = arith.constant dense<0.000000e+00> : vector<8x128xf32>
    %6 = tpu.matmul %4, %5, %cst {dimension_numbers = #tpu.dot_dimension_numbers<[1], [0], [0], [1], [0, 0, 1, 1], [], []>} : vector<8x1024xbf16>, vector<1024x128xbf16>, vector<8x128xf32> -> vector<8x128xf32>
    %7 = arith.addf %3, %6 : vector<8x128xf32>
    %c0_6 = arith.constant 0 : index
    %c0_7 = arith.constant 0 : index
    %8 = vector.load %arg5[%c0_6, %c0_7] : memref<8x128xf32, #tpu.memory_space<vmem>>, vector<8x128xf32>
    tpu.vector_store %arg5[%c0_6, %c0_7], %7 {strides = array<i32>} : memref<8x128xf32, #tpu.memory_space<vmem>>, vector<8x128xf32>,
    %c1_i32 = arith.constant 1 : i32
    %9 = arith.cmpi eq, %arg1, %c1_i32 : i32
    %10 = arith.extui %9 : i1 to i32
    %c0_i32_8 = arith.constant 0 : i32
    %11 = arith.cmpi ne, %10, %c0_i32_8 : i32
    scf.if %11 {
      %c0_9 = arith.constant 0 : index
      %c0_10 = arith.constant 0 : index
      %12 = vector.load %arg5[%c0_9, %c0_10] : memref<8x128xf32, #tpu.memory_space<vmem>>, vector<8x128xf32>
      %cst_11 = arith.constant 0.000000e+00 : f32
      %13 = vector.broadcast %cst_11 : f32 to vector<8x128xf32>
      %14 = arith.subf %13, %12 : vector<8x128xf32>
      %15 = math.exp %14 : vector<8x128xf32>
      %cst_12 = arith.constant 1.000000e+00 : f32
      %16 = vector.broadcast %cst_12 : f32 to vector<8x128xf32>
      %17 = arith.addf %16, %15 : vector<8x128xf32>
      %cst_13 = arith.constant 1.000000e+00 : f32
      %18 = vector.broadcast %cst_13 : f32 to vector<8x128xf32>
      %19 = arith.divf %18, %17 : vector<8x128xf32>
      %c0_14 = arith.constant 0 : index
      %c0_15 = arith.constant 0 : index
      %20 = vector.load %arg4[%c0_14, %c0_15] : memref<8x128xf32, #tpu.memory_space<vmem>>, vector<8x128xf32>
      tpu.vector_store %arg4[%c0_14, %c0_15], %19 {strides = array<i32>} : memref<8x128xf32, #tpu.memory_space<vmem>>, vector<8x128xf32>,
    } else {
    }
    return
  }
  func.func @transform_0(%arg0: i32, %arg1: i32) -> (i32, i32) {
    %c0_i32 = arith.constant 0 : i32
    return %arg0, %arg1 : i32, i32
  }
  func.func @transform_1(%arg0: i32, %arg1: i32) -> (i32, i32) {
    %c0_i32 = arith.constant 0 : i32
    %c0_i32_0 = arith.constant 0 : i32
    return %arg1, %c0_i32 : i32, i32
  }
  func.func @transform_2(%arg0: i32, %arg1: i32) -> (i32, i32) {
    %c0_i32 = arith.constant 0 : i32
    %c0_i32_0 = arith.constant 0 : i32
    return %arg0, %c0_i32 : i32, i32
  }
}

</mosaic_0001>

<llo_original>
// kernel: netd_forward.4
$region0: #{netd_forward.4}
  #allocation0 [shape = 'u32[]', space=smem, size = 0x4, offset = 0x4, fixed_abs, tag = 'smem constant byte address 0x4 - core index']
  #allocation1 [shape = 'u32[144,128]{1,0:T(1,128)}', space=vmem, size = 0x12000, scoped, tag = 'internal scratch']
  #allocation2 [shape = 'f32[128,128]{1,0:T(8,128)}', space=vmem, size = 0x10000, scoped, tag = 'scratch operand']
  %s0 = inlined_call_operand.vmem [shape: bf16[128,128], index: 0, kind: input, shape index: {}]
  %s1 = inlined_call_operand.vmem [shape: bf16[128,128], index: 1, kind: input, shape index: {}]
  %s2 = inlined_call_operand.vmem [shape: bf16[128,128], index: 2, kind: output, shape index: {}]
  %s3 = sld [smem:[#allocation0]]
  $region26: #{netd_forward.4} parent=0
    _
  %s5 = ssub.s32 1, %s3
  %s6 = scalar_select 0, %s5, %s3
  // Predicated region
  $region2: #{netd_forward.4} parent=0 // pred_check
    _
  $region3: #{netd_forward.4} parent=0 // pred_check_branch
    %8 = sbr.rel (0) target = $region5
  $region4: #{netd_forward.4} parent=0 // pred_region
    _
  $region5: #{netd_forward.4} parent=0 // pred_fallthru
    _
  // Predicated region
  $region6: #{netd_forward.4} parent=0 // pred_check
    _
  $region7: #{netd_forward.4} parent=0 // pred_check_branch
    %10 = sbr.rel (0) target = $region9
  $region8: #{netd_forward.4} parent=0 // pred_region
    _
  $region9: #{netd_forward.4} parent=0 // pred_fallthru
    _
  %p12 = scmp.eq.s32.totalorder 0, 0
  // Predicated region
  $region10: #{netd_forward.4} parent=0 // pred_check
    %p13 = pneg %p12
  $region11: #{netd_forward.4} parent=0 // pred_check_branch
    %15 = sbr.rel (%p13) target = $region13
  $region12: #{netd_forward.4} parent=0 // pred_region
    %16 = vst [vmem:[#allocation2] sm:$0xff] 0.0
    %17 = vst [vmem:[#allocation2 + $0x8] sm:$0xff] 0.0
    %18 = vst [vmem:[#allocation2 + $0x10] sm:$0xff] 0.0
    %19 = vst [vmem:[#allocation2 + $0x18] sm:$0xff] 0.0
    %20 = vst [vmem:[#allocation2 + $0x20] sm:$0xff] 0.0
    %21 = vst [vmem:[#allocation2 + $0x28] sm:$0xff] 0.0
    %22 = vst [vmem:[#allocation2 + $0x30] sm:$0xff] 0.0
    %23 = vst [vmem:[#allocation2 + $0x38] sm:$0xff] 0.0
    %24 = vst [vmem:[#allocation2 + $0x40] sm:$0xff] 0.0
    %25 = vst [vmem:[#allocation2 + $0x48] sm:$0xff] 0.0
    %26 = vst [vmem:[#allocation2 + $0x50] sm:$0xff] 0.0
    %27 = vst [vmem:[#allocation2 + $0x58] sm:$0xff] 0.0
    %28 = vst [vmem:[#allocation2 + $0x60] sm:$0xff] 0.0
    %29 = vst [vmem:[#allocation2 + $0x68] sm:$0xff] 0.0
    %30 = vst [vmem:[#allocation2 + $0x70] sm:$0xff] 0.0
    %31 = vst [vmem:[#allocation2 + $0x78] sm:$0xff] 0.0
  $region13: #{netd_forward.4} parent=0 // pred_fallthru
    _
  %v32 = vld [vmem:[#allocation2] sm:$0xff]
  %v33 = vld [vmem:[#allocation2 + $0x8] sm:$0xff]
  %v34 = vld [vmem:[#allocation2 + $0x10] sm:$0xff]
  %v35 = vld [vmem:[#allocation2 + $0x18] sm:$0xff]
  %v36 = vld [vmem:[#allocation2 + $0x20] sm:$0xff]
  %v37 = vld [vmem:[#allocation2 + $0x28] sm:$0xff]
  %v38 = vld [vmem:[#allocation2 + $0x30] sm:$0xff]
  %v39 = vld [vmem:[#allocation2 + $0x38] sm:$0xff]
  %v40 = vld [vmem:[#allocation2 + $0x40] sm:$0xff]
  %v41 = vld [vmem:[#allocation2 + $0x48] sm:$0xff]
  %v42 = vld [vmem:[#allocation2 + $0x50] sm:$0xff]
  %v43 = vld [vmem:[#allocation2 + $0x58] sm:$0xff]
  %v44 = vld [vmem:[#allocation2 + $0x60] sm:$0xff]
  %v45 = vld [vmem:[#allocation2 + $0x68] sm:$0xff]
  %v46 = vld [vmem:[#allocation2 + $0x70] sm:$0xff]
  %v47 = vld [vmem:[#allocation2 + $0x78] sm:$0xff]
  %v48 = vld [vmem:[%s0] sm:$0xf]
  %v49 = vld [vmem:[%s0 + $0x4] sm:$0xf]
  %v50 = vld [vmem:[%s0 + $0x8] sm:$0xf]
  %v51 = vld [vmem:[%s0 + $0xc] sm:$0xf]
  %v52 = vld [vmem:[%s0 + $0x10] sm:$0xf]
  %v53 = vld [vmem:[%s0 + $0x14] sm:$0xf]
  %v54 = vld [vmem:[%s0 + $0x18] sm:$0xf]
  %v55 = vld [vmem:[%s0 + $0x1c] sm:$0xf]
  %v56 = vld [vmem:[%s0 + $0x20] sm:$0xf]
  %v57 = vld [vmem:[%s0 + $0x24] sm:$0xf]
  %v58 = vld [vmem:[%s0 + $0x28] sm:$0xf]
  %v59 = vld [vmem:[%s0 + $0x2c] sm:$0xf]
  %v60 = vld [vmem:[%s0 + $0x30] sm:$0xf]
  %v61 = vld [vmem:[%s0 + $0x34] sm:$0xf]
  %v62 = vld [vmem:[%s0 + $0x38] sm:$0xf]
  %v63 = vld [vmem:[%s0 + $0x3c] sm:$0xf]
  %v64 = vld [vmem:[%s1] sm:$0xf]
  %v65 = vld [vmem:[%s1 + $0x4] sm:$0xf]
  %v66 = vld [vmem:[%s1 + $0x8] sm:$0xf]
  %v67 = vld [vmem:[%s1 + $0xc] sm:$0xf]
  %v68 = vld [vmem:[%s1 + $0x10] sm:$0xf]
  %v69 = vld [vmem:[%s1 + $0x14] sm:$0xf]
  %v70 = vld [vmem:[%s1 + $0x18] sm:$0xf]
  %v71 = vld [vmem:[%s1 + $0x1c] sm:$0xf]
  %v72 = vld [vmem:[%s1 + $0x20] sm:$0xf]
  %v73 = vld [vmem:[%s1 + $0x24] sm:$0xf]
  %v74 = vld [vmem:[%s1 + $0x28] sm:$0xf]
  %v75 = vld [vmem:[%s1 + $0x2c] sm:$0xf]
  %v76 = vld [vmem:[%s1 + $0x30] sm:$0xf]
  %v77 = vld [vmem:[%s1 + $0x34] sm:$0xf]
  %v78 = vld [vmem:[%s1 + $0x38] sm:$0xf]
  %v79 = vld [vmem:[%s1 + $0x3c] sm:$0xf]
  %v96 = vunpack.c.l.b16 %v48
  %v97 = vunpack.c.l.b16 %v49
  %v98 = vunpack.c.l.b16 %v50
  %v99 = vunpack.c.l.b16 %v51
  %v100 = vunpack.c.l.b16 %v52
  %v101 = vunpack.c.l.b16 %v53
  %v102 = vunpack.c.l.b16 %v54
  %v103 = vunpack.c.l.b16 %v55
  %v104 = vunpack.c.l.b16 %v56
  %v105 = vunpack.c.l.b16 %v57
  %v106 = vunpack.c.l.b16 %v58
  %v107 = vunpack.c.l.b16 %v59
  %v108 = vunpack.c.l.b16 %v60
  %v109 = vunpack.c.l.b16 %v61
  %v110 = vunpack.c.l.b16 %v62
  %v111 = vunpack.c.l.b16 %v63
  %v112 = vpack.c.b16 %v97, %v96
  %v113 = vpack.c.b16 %v99, %v98
  %v114 = vpack.c.b16 %v101, %v100
  %v115 = vpack.c.b16 %v103, %v102
  %v116 = vpack.c.b16 %v105, %v104
  %v117 = vpack.c.b16 %v107, %v106
  %v118 = vpack.c.b16 %v109, %v108
  %v119 = vpack.c.b16 %v111, %v110
  %v144 = vunpack.c.l.b16 %v64
  %v145 = vunpack.c.l.b16 %v65
  %v146 = vunpack.c.l.b16 %v66
  %v147 = vunpack.c.l.b16 %v67
  %v148 = vunpack.c.l.b16 %v68
  %v149 = vunpack.c.l.b16 %v69
  %v150 = vunpack.c.l.b16 %v70
  %v151 = vunpack.c.l.b16 %v71
  %v152 = vunpack.c.l.b16 %v72
  %v153 = vunpack.c.l.b16 %v73
  %v154 = vunpack.c.l.b16 %v74
  %v155 = vunpack.c.l.b16 %v75
  %v156 = vunpack.c.l.b16 %v76
  %v157 = vunpack.c.l.b16 %v77
  %v158 = vunpack.c.l.b16 %v78
  %v159 = vunpack.c.l.b16 %v79
  %v160 = vpack.c.b16 %v145, %v144
  %v161 = vpack.c.b16 %v147, %v146
  %v162 = vpack.c.b16 %v149, %v148
  %v163 = vpack.c.b16 %v151, %v150
  %v164 = vpack.c.b16 %v153, %v152
  %v165 = vpack.c.b16 %v155, %v154
  %v166 = vpack.c.b16 %v157, %v156
  %v167 = vpack.c.b16 %v159, %v158
  %176 = vmatprep.subr.bf16.mxu0 0
  %177 = vmatpush1.bf16.msra.mxu0 %v160
  %178 = vmatprep.subr.bf16.mxu0 0
  %179 = vmatpush1.bf16.msra.mxu0 %v161
  %180 = vmatprep.subr.bf16.mxu0 0
  %181 = vmatpush1.bf16.msra.mxu0 %v162
  %182 = vmatprep.subr.bf16.mxu0 0
  %183 = vmatpush1.bf16.msra.mxu0 %v163
  %184 = vmatprep.subr.bf16.mxu0 0
  %185 = vmatpush1.bf16.msra.mxu0 %v164
  %186 = vmatprep.subr.bf16.mxu0 0
  %187 = vmatpush1.bf16.msra.mxu0 %v165
  %188 = vmatprep.subr.bf16.mxu0 0
  %189 = vmatpush1.bf16.msra.mxu0 %v166
  %190 = vmatprep.subr.bf16.mxu0 0
  %191 = vmatpush1.bf16.msra.mxu0 %v167
  %192 = vmatprep.subr.bf16.mxu0 0
  %193 = vmatpush1.bf16.msra.mxu0 0
  %194 = vmatprep.subr.bf16.mxu0 0
  %195 = vmatpush1.bf16.msra.mxu0 0
  %196 = vmatprep.subr.bf16.mxu0 0
  %197 = vmatpush1.bf16.msra.mxu0 0
  %198 = vmatprep.subr.bf16.mxu0 0
  %199 = vmatpush1.bf16.msra.mxu0 0
  %200 = vmatprep.subr.bf16.mxu0 0
  %201 = vmatpush1.bf16.msra.mxu0 0
  %202 = vmatprep.subr.bf16.mxu0 0
  %203 = vmatpush1.bf16.msra.mxu0 0
  %204 = vmatprep.subr.bf16.mxu0 0
  %205 = vmatpush1.bf16.msra.mxu0 0
  %206 = vmatprep.subr.bf16.mxu0 0
  %207 = vmatpush1.bf16.msra.mxu0 0
  %208 = vmatprep.mubr.bf16.mxu0 0
  %209 = vmatmul.mubr.bf16.gmra.mrb[0].mxu0 %v112
  %v210 = vpop.f32.mrb[0].mxu0
  %v211 = vadd.f32 0.0, %v210
  %v212 = vpop.f32.mrb[0].mxu0
  %v213 = vpop.f32.mrb[0].mxu0
  %v214 = vadd.f32 0.0, %v213
  %v215 = vpop.f32.mrb[0].mxu0
  %216 = vmatprep.mubr.bf16.mxu0 0
  %217 = vmatmul.mubr.bf16.gmra.mrb[0].mxu0 %v113
  %v218 = vpop.f32.mrb[0].mxu0
  %v219 = vadd.f32 0.0, %v218
  %v220 = vpop.f32.mrb[0].mxu0
  %v221 = vpop.f32.mrb[0].mxu0
  %v222 = vadd.f32 0.0, %v221
  %v223 = vpop.f32.mrb[0].mxu0
  %224 = vmatprep.mubr.bf16.mxu0 0
  %225 = vmatmul.mubr.bf16.gmra.mrb[0].mxu0 %v114
  %v226 = vpop.f32.mrb[0].mxu0
  %v227 = vadd.f32 0.0, %v226
  %v228 = vpop.f32.mrb[0].mxu0
  %v229 = vpop.f32.mrb[0].mxu0
  %v230 = vadd.f32 0.0, %v229
  %v231 = vpop.f32.mrb[0].mxu0
  %232 = vmatprep.mubr.bf16.mxu0 0
  %233 = vmatmul.mubr.bf16.gmra.mrb[0].mxu0 %v115
  %v234 = vpop.f32.mrb[0].mxu0
  %v235 = vadd.f32 0.0, %v234
  %v236 = vpop.f32.mrb[0].mxu0
  %v237 = vpop.f32.mrb[0].mxu0
  %v238 = vadd.f32 0.0, %v237
  %v239 = vpop.f32.mrb[0].mxu0
  %240 = vmatprep.mubr.bf16.mxu0 0
  %241 = vmatmul.mubr.bf16.gmra.mrb[0].mxu0 %v116
  %v242 = vpop.f32.mrb[0].mxu0
  %v243 = vadd.f32 0.0, %v242
  %v244 = vpop.f32.mrb[0].mxu0
  %v245 = vpop.f32.mrb[0].mxu0
  %v246 = vadd.f32 0.0, %v245
  %v247 = vpop.f32.mrb[0].mxu0
  %248 = vmatprep.mubr.bf16.mxu0 0
  %249 = vmatmul.mubr.bf16.gmra.mrb[0].mxu0 %v117
  %v250 = vpop.f32.mrb[0].mxu0
  %v251 = vadd.f32 0.0, %v250
  %v252 = vpop.f32.mrb[0].mxu0
  %v253 = vpop.f32.mrb[0].mxu0
  %v254 = vadd.f32 0.0, %v253
  %v255 = vpop.f32.mrb[0].mxu0
  %256 = vmatprep.mubr.bf16.mxu0 0
  %257 = vmatmul.mubr.bf16.gmra.mrb[0].mxu0 %v118
  %v258 = vpop.f32.mrb[0].mxu0
  %v259 = vadd.f32 0.0, %v258
  %v260 = vpop.f32.mrb[0].mxu0
  %v261 = vpop.f32.mrb[0].mxu0
  %v262 = vadd.f32 0.0, %v261
  %v263 = vpop.f32.mrb[0].mxu0
  %264 = vmatprep.mubr.bf16.mxu0 0
  %265 = vmatmul.mubr.bf16.gmra.mrb[0].mxu0 %v119
  %v266 = vpop.f32.mrb[0].mxu0
  %v267 = vadd.f32 0.0, %v266
  %v268 = vpop.f32.mrb[0].mxu0
  %v269 = vpop.f32.mrb[0].mxu0
  %v270 = vadd.f32 0.0, %v269
  %v271 = vpop.f32.mrb[0].mxu0
  %272 = vdwg.mxu0
  %v273 = vadd.f32 %v32, %v211
  %v274 = vadd.f32 %v33, %v214
  %v275 = vadd.f32 %v34, %v219
  %v276 = vadd.f32 %v35, %v222
  %v277 = vadd.f32 %v36, %v227
  %v278 = vadd.f32 %v37, %v230
  %v279 = vadd.f32 %v38, %v235
  %v280 = vadd.f32 %v39, %v238
  %v281 = vadd.f32 %v40, %v243
  %v282 = vadd.f32 %v41, %v246
  %v283 = vadd.f32 %v42, %v251
  %v284 = vadd.f32 %v43, %v254
  %v285 = vadd.f32 %v44, %v259
  %v286 = vadd.f32 %v45, %v262
  %v287 = vadd.f32 %v46, %v267
  %v288 = vadd.f32 %v47, %v270
  %289 = vst [vmem:[#allocation2] sm:$0xff] %v273
  %290 = vst [vmem:[#allocation2 + $0x8] sm:$0xff] %v274
  %291 = vst [vmem:[#allocation2 + $0x10] sm:$0xff] %v275
  %292 = vst [vmem:[#allocation2 + $0x18] sm:$0xff] %v276
  %293 = vst [vmem:[#allocation2 + $0x20] sm:$0xff] %v277
  %294 = vst [vmem:[#allocation2 + $0x28] sm:$0xff] %v278
  %295 = vst [vmem:[#allocation2 + $0x30] sm:$0xff] %v279
  %296 = vst [vmem:[#allocation2 + $0x38] sm:$0xff] %v280
  %297 = vst [vmem:[#allocation2 + $0x40] sm:$0xff] %v281
  %298 = vst [vmem:[#allocation2 + $0x48] sm:$0xff] %v282
  %299 = vst [vmem:[#allocation2 + $0x50] sm:$0xff] %v283
  %300 = vst [vmem:[#allocation2 + $0x58] sm:$0xff] %v284
  %301 = vst [vmem:[#allocation2 + $0x60] sm:$0xff] %v285
  %302 = vst [vmem:[#allocation2 + $0x68] sm:$0xff] %v286
  %303 = vst [vmem:[#allocation2 + $0x70] sm:$0xff] %v287
  %304 = vst [vmem:[#allocation2 + $0x78] sm:$0xff] %v288
  // Predicated region
  $region14: #{netd_forward.4} parent=0 // pred_check
    %p305 = pneg %p12
  $region15: #{netd_forward.4} parent=0 // pred_check_branch
    %307 = sbr.rel (%p305) target = $region17
  $region16: #{netd_forward.4} parent=0 // pred_region
    %v308 = vld [vmem:[#allocation2] sm:$0xff]
    %v309 = vld [vmem:[#allocation2 + $0x8] sm:$0xff]
    %v310 = vld [vmem:[#allocation2 + $0x10] sm:$0xff]
    %v311 = vld [vmem:[#allocation2 + $0x18] sm:$0xff]
    %v312 = vld [vmem:[#allocation2 + $0x20] sm:$0xff]
    %v313 = vld [vmem:[#allocation2 + $0x28] sm:$0xff]
    %v314 = vld [vmem:[#allocation2 + $0x30] sm:$0xff]
    %v315 = vld [vmem:[#allocation2 + $0x38] sm:$0xff]
    %v316 = vld [vmem:[#allocation2 + $0x40] sm:$0xff]
    %v317 = vld [vmem:[#allocation2 + $0x48] sm:$0xff]
    %v318 = vld [vmem:[#allocation2 + $0x50] sm:$0xff]
    %v319 = vld [vmem:[#allocation2 + $0x58] sm:$0xff]
    %v320 = vld [vmem:[#allocation2 + $0x60] sm:$0xff]
    %v321 = vld [vmem:[#allocation2 + $0x68] sm:$0xff]
    %v322 = vld [vmem:[#allocation2 + $0x70] sm:$0xff]
    %v323 = vld [vmem:[#allocation2 + $0x78] sm:$0xff]
    %vm324 = vcmp.gt.f32.partialorder %v308, 0.0
    %vm325 = vcmp.gt.f32.partialorder %v309, 0.0
    %vm326 = vcmp.gt.f32.partialorder %v310, 0.0
    %vm327 = vcmp.gt.f32.partialorder %v311, 0.0
    %vm328 = vcmp.gt.f32.partialorder %v312, 0.0
    %vm329 = vcmp.gt.f32.partialorder %v313, 0.0
    %vm330 = vcmp.gt.f32.partialorder %v314, 0.0
    %vm331 = vcmp.gt.f32.partialorder %v315, 0.0
    %vm332 = vcmp.gt.f32.partialorder %v316, 0.0
    %vm333 = vcmp.gt.f32.partialorder %v317, 0.0
    %vm334 = vcmp.gt.f32.partialorder %v318, 0.0
    %vm335 = vcmp.gt.f32.partialorder %v319, 0.0
    %vm336 = vcmp.gt.f32.partialorder %v320, 0.0
    %vm337 = vcmp.gt.f32.partialorder %v321, 0.0
    %vm338 = vcmp.gt.f32.partialorder %v322, 0.0
    %vm339 = vcmp.gt.f32.partialorder %v323, 0.0
    %v340 = vmul.f32 %v308, 0.2
    %v341 = vmul.f32 %v309, 0.2
    %v342 = vmul.f32 %v310, 0.2
    %v343 = vmul.f32 %v311, 0.2
    %v344 = vmul.f32 %v312, 0.2
    %v345 = vmul.f32 %v313, 0.2
    %v346 = vmul.f32 %v314, 0.2
    %v347 = vmul.f32 %v315, 0.2
    %v348 = vmul.f32 %v316, 0.2
    %v349 = vmul.f32 %v317, 0.2
    %v350 = vmul.f32 %v318, 0.2
    %v351 = vmul.f32 %v319, 0.2
    %v352 = vmul.f32 %v320, 0.2
    %v353 = vmul.f32 %v321, 0.2
    %v354 = vmul.f32 %v322, 0.2
    %v355 = vmul.f32 %v323, 0.2
    %v356 = vsel %vm324, %v308, %v340
    %v357 = vsel %vm325, %v309, %v341
    %v358 = vsel %vm326, %v310, %v342
    %v359 = vsel %vm327, %v311, %v343
    %v360 = vsel %vm328, %v312, %v344
    %v361 = vsel %vm329, %v313, %v345
    %v362 = vsel %vm330, %v314, %v346
    %v363 = vsel %vm331, %v315, %v347
    %v364 = vsel %vm332, %v316, %v348
    %v365 = vsel %vm333, %v317, %v349
    %v366 = vsel %vm334, %v318, %v350
    %v367 = vsel %vm335, %v319, %v351
    %v368 = vsel %vm336, %v320, %v352
    %v369 = vsel %vm337, %v321, %v353
    %v370 = vsel %vm338, %v322, %v354
    %v371 = vsel %vm339, %v323, %v355
    %v372 = vpack.c.bf16 %v357, %v356
    %v373 = vpack.c.bf16 %v359, %v358
    %v374 = vpack.c.bf16 %v361, %v360
    %v375 = vpack.c.bf16 %v363, %v362
    %v376 = vpack.c.bf16 %v365, %v364
    %v377 = vpack.c.bf16 %v367, %v366
    %v378 = vpack.c.bf16 %v369, %v368
    %v379 = vpack.c.bf16 %v371, %v370
    %v388 = vunpack.c.l.b16 %v372
    %v389 = vunpack.c.h.b16 %v372
    %v390 = vunpack.c.l.b16 %v373
    %v391 = vunpack.c.h.b16 %v373
    %v392 = vunpack.c.l.b16 %v374
    %v393 = vunpack.c.h.b16 %v374
    %v394 = vunpack.c.l.b16 %v375
    %v395 = vunpack.c.h.b16 %v375
    %v396 = vunpack.c.l.b16 %v376
    %v397 = vunpack.c.h.b16 %v376
    %v398 = vunpack.c.l.b16 %v377
    %v399 = vunpack.c.h.b16 %v377
    %v400 = vunpack.c.l.b16 %v378
    %v401 = vunpack.c.h.b16 %v378
    %v402 = vunpack.c.l.b16 %v379
    %v403 = vunpack.c.h.b16 %v379
    %v404 = vpack.c.b16 %v388, %v388
    %v405 = vpack.c.b16 %v389, %v389
    %v406 = vpack.c.b16 %v390, %v390
    %v407 = vpack.c.b16 %v391, %v391
    %v408 = vpack.c.b16 %v392, %v392
    %v409 = vpack.c.b16 %v393, %v393
    %v410 = vpack.c.b16 %v394, %v394
    %v411 = vpack.c.b16 %v395, %v395
    %v412 = vpack.c.b16 %v396, %v396
    %v413 = vpack.c.b16 %v397, %v397
    %v414 = vpack.c.b16 %v398, %v398
    %v415 = vpack.c.b16 %v399, %v399
    %v416 = vpack.c.b16 %v400, %v400
    %v417 = vpack.c.b16 %v401, %v401
    %v418 = vpack.c.b16 %v402, %v402
    %v419 = vpack.c.b16 %v403, %v403
    %436 = vst [vmem:[%s2] sm:$0xf] %v404
    %437 = vst [vmem:[%s2 + $0x4] sm:$0xf] %v405
    %438 = vst [vmem:[%s2 + $0x8] sm:$0xf] %v406
    %439 = vst [vmem:[%s2 + $0xc] sm:$0xf] %v407
    %440 = vst [vmem:[%s2 + $0x10] sm:$0xf] %v408
    %441 = vst [vmem:[%s2 + $0x14] sm:$0xf] %v409
    %442 = vst [vmem:[%s2 + $0x18] sm:$0xf] %v410
    %443 = vst [vmem:[%s2 + $0x1c] sm:$0xf] %v411
    %444 = vst [vmem:[%s2 + $0x20] sm:$0xf] %v412
    %445 = vst [vmem:[%s2 + $0x24] sm:$0xf] %v413
    %446 = vst [vmem:[%s2 + $0x28] sm:$0xf] %v414
    %447 = vst [vmem:[%s2 + $0x2c] sm:$0xf] %v415
    %448 = vst [vmem:[%s2 + $0x30] sm:$0xf] %v416
    %449 = vst [vmem:[%s2 + $0x34] sm:$0xf] %v417
    %450 = vst [vmem:[%s2 + $0x38] sm:$0xf] %v418
    %451 = vst [vmem:[%s2 + $0x3c] sm:$0xf] %v419
  $region17: #{netd_forward.4} parent=0 // pred_fallthru
    _
  // Predicated region
  $region18: #{netd_forward.4} parent=0 // pred_check
    _
  $region19: #{netd_forward.4} parent=0 // pred_check_branch
    %453 = sbr.rel (0) target = $region21
  $region20: #{netd_forward.4} parent=0 // pred_region
    _
  $region21: #{netd_forward.4} parent=0 // pred_fallthru
    _
  // Predicated region
  $region22: #{netd_forward.4} parent=0 // pred_check
    _
  $region23: #{netd_forward.4} parent=0 // pred_check_branch
    %455 = sbr.rel (0) target = $region25
  $region24: #{netd_forward.4} parent=0 // pred_region
    _
  $region25: #{netd_forward.4} parent=0 // pred_fallthru
    _

// kernel: netd_forward.6
$region0: #{netd_forward.6}
  #allocation0 [shape = 'u32[]', space=smem, size = 0x4, offset = 0x4, fixed_abs, tag = 'smem constant byte address 0x4 - core index']
  #allocation1 [shape = 'u32[144,128]{1,0:T(1,128)}', space=vmem, size = 0x12000, scoped, tag = 'internal scratch']
  %s0 = inlined_call_operand.vmem [shape: f32[32,128], index: 0, kind: input, shape index: {}]
  %s1 = inlined_call_operand.vmem [shape: f32[1,128], index: 1, kind: input, shape index: {}]
  %s2 = inlined_call_operand.vmem [shape: f32[1,128], index: 2, kind: input, shape index: {}]
  %s3 = inlined_call_operand.vmem [shape: f32[32,128], index: 3, kind: output, shape index: {}]
  %s4 = sld [smem:[#allocation0]]
  $region22: #{netd_forward.6} parent=0
    _
  %s6 = ssub.s32 1, %s4
  %s7 = scalar_select 0, %s6, %s4
  // Predicated region
  $region2: #{netd_forward.6} parent=0 // pred_check
    _
  $region3: #{netd_forward.6} parent=0 // pred_check_branch
    %9 = sbr.rel (0) target = $region5
  $region4: #{netd_forward.6} parent=0 // pred_region
    _
  $region5: #{netd_forward.6} parent=0 // pred_fallthru
    _
  // Predicated region
  $region6: #{netd_forward.6} parent=0 // pred_check
    _
  $region7: #{netd_forward.6} parent=0 // pred_check_branch
    %11 = sbr.rel (0) target = $region9
  $region8: #{netd_forward.6} parent=0 // pred_region
    _
  $region9: #{netd_forward.6} parent=0 // pred_fallthru
    _
  // Predicated region
  $region10: #{netd_forward.6} parent=0 // pred_check
    _
  $region11: #{netd_forward.6} parent=0 // pred_check_branch
    %13 = sbr.rel (0) target = $region13
  $region12: #{netd_forward.6} parent=0 // pred_region
    _
  $region13: #{netd_forward.6} parent=0 // pred_fallthru
    _
  %v14 = vld [vmem:[%s0] sm:$0xff]
  %v15 = vld [vmem:[%s0 + $0x8] sm:$0xff]
  %v16 = vld [vmem:[%s0 + $0x10] sm:$0xff]
  %v17 = vld [vmem:[%s0 + $0x18] sm:$0xff]
  %v18 = vld [vmem:[%s1] sm:$0x1]
  %v20 = vlaneseq
  %v21 = vshrl.u32 %v20, 7
  %v22 = vsub.s32 0, %v21
  %v23 = vrot.slane %v18, %v22
  %v25 = vmul.f32 %v14, %v23
  %v26 = vmul.f32 %v15, %v23
  %v27 = vmul.f32 %v16, %v23
  %v28 = vmul.f32 %v17, %v23
  %v29 = vld [vmem:[%s2] sm:$0x1]
  %v31 = vlaneseq
  %v32 = vshrl.u32 %v31, 7
  %v33 = vsub.s32 0, %v32
  %v34 = vrot.slane %v29, %v33
  %v36 = vadd.f32 %v25, %v34
  %v37 = vadd.f32 %v26, %v34
  %v38 = vadd.f32 %v27, %v34
  %v39 = vadd.f32 %v28, %v34
  %vm40 = vcmp.gt.f32.partialorder %v36, 0.0
  %vm41 = vcmp.gt.f32.partialorder %v37, 0.0
  %vm42 = vcmp.gt.f32.partialorder %v38, 0.0
  %vm43 = vcmp.gt.f32.partialorder %v39, 0.0
  %v44 = vmul.f32 %v36, 0.2
  %v45 = vmul.f32 %v37, 0.2
  %v46 = vmul.f32 %v38, 0.2
  %v47 = vmul.f32 %v39, 0.2
  %v48 = vsel %vm40, %v36, %v44
  %v49 = vsel %vm41, %v37, %v45
  %v50 = vsel %vm42, %v38, %v46
  %v51 = vsel %vm43, %v39, %v47
  %52 = vst [vmem:[%s3] sm:$0xff] %v48
  %53 = vst [vmem:[%s3 + $0x8] sm:$0xff] %v49
  %54 = vst [vmem:[%s3 + $0x10] sm:$0xff] %v50
  %55 = vst [vmem:[%s3 + $0x18] sm:$0xff] %v51
  // Predicated region
  $region14: #{netd_forward.6} parent=0 // pred_check
    _
  $region15: #{netd_forward.6} parent=0 // pred_check_branch
    %57 = sbr.rel (0) target = $region17
  $region16: #{netd_forward.6} parent=0 // pred_region
    _
  $region17: #{netd_forward.6} parent=0 // pred_fallthru
    _
  // Predicated region
  $region18: #{netd_forward.6} parent=0 // pred_check
    _
  $region19: #{netd_forward.6} parent=0 // pred_check_branch
    %59 = sbr.rel (0) target = $region21
  $region20: #{netd_forward.6} parent=0 // pred_region
    _
  $region21: #{netd_forward.6} parent=0 // pred_fallthru
    _

// kernel: netd_forward.7
$region0: #{netd_forward.7}
  #allocation0 [shape = 'u32[]', space=smem, size = 0x4, offset = 0x4, fixed_abs, tag = 'smem constant byte address 0x4 - core index']
  #allocation1 [shape = 'u32[144,128]{1,0:T(1,128)}', space=vmem, size = 0x12000, scoped, tag = 'internal scratch']
  #allocation2 [shape = 'f32[8,128]{1,0:T(8,128)}', space=vmem, size = 0x1000, scoped, tag = 'scratch operand']
  %s0 = inlined_call_operand.vmem [shape: bf16[8,2048], index: 0, kind: input, shape index: {}]
  %s1 = inlined_call_operand.vmem [shape: bf16[2048,128], index: 1, kind: input, shape index: {}]
  %s2 = inlined_call_operand.vmem [shape: f32[8,128], index: 2, kind: output, shape index: {}]
  %s3 = sld [smem:[#allocation0]]
  $region49: #{netd_forward.7} parent=0
    _
  %s5 = ssub.s32 1, %s3
  %s6 = scalar_select 0, %s5, %s3
  loop: start=0, step=1, limit=4
  $region2: #{netd_forward.7} parent=0 // loop_pre_header
    _
  $region3: #{netd_forward.7} parent=0 // loop_header
    %s8 = sphi 0, %s12
    %p9 = scmp.ge.s32.totalorder %s8, 4
    %s15 = sphi 0, %s27
    %s16 = sphi 0, %s23
    %s17 = sphi 0, %s15
    %s18 = sphi 0, %s16
    %s19 = sphi 0, %s17
    %s20 = sphi 0, %s18
    %s32 = sphi 0, %s34
    %s35 = sphi 0, %s32
    %s36 = sphi 0, %s35
    %s52 = sphi 0, %s36
    %s58 = sphi 0, %s60
    %s61 = sphi 0, %s58
    %s62 = sphi 0, %s61
    %s78 = sphi 0, %s62
    %s84 = sphi 0, %s86
    %s87 = sphi 0, %s84
    %s88 = sphi 0, %s87
    %s104 = sphi 0, %s88
  $region4: #{netd_forward.7} parent=0 // loop_header_branch
    %11 = sbr.rel (%p9) target = $region8
  $region5: #{netd_forward.7} parent=0 // loop_body
    %s13 = ssub.s32 %s8, 1
    %s14 = ssub.s32 %s8, 2
    %s21 = sadd.s32 1, %s16
    %p22 = scmp.ge.s32.totalorder %s21, 2
    %s23 = scalar_select %p22, 0, %s21
    %s24 = sadd.s32 1, %s15
    %s25 = scalar_select %p22, %s24, %s15
    %p26 = scmp.ge.s32.totalorder %s25, 1
    %s27 = scalar_select %p26, 0, %s25
    %s28 = ssub.s32 %s15, %s27
    %s29 = ssub.s32 %s16, %s23
    %s30 = sor.u32 %s28, %s29
    %p31 = scmp.eq.s32.totalorder %s30, 0
    %s33 = sadd.s32 %s32, 1
    %s34 = scalar_select %p31, %s32, %s33
    %p37 = pneg %p31
    %p38 = scmp.eq.s32.totalorder %s8, 1
    %p39 = por %p37, %p38
    %p40 = scmp.ne.s32.totalorder %s32, %s35
    %p41 = scmp.eq.s32.totalorder %s8, 0
    %p42 = por %p40, %p41
    %p43 = scmp.ne.s32.totalorder %s32, %s35
    %p44 = scmp.eq.s32.totalorder %s13, 1
    %p45 = por %p43, %p44
    %p46 = scmp.ne.s32.totalorder %s35, %s36
    %p47 = scmp.eq.s32.totalorder %s13, 0
    %p48 = por %p46, %p47
    %p49 = scmp.ne.s32.totalorder %s35, %s36
    %p50 = scmp.eq.s32.totalorder %s14, 1
    %p51 = por %p49, %p50
    %p53 = scmp.ne.s32.totalorder %s36, %s52
    %p54 = scmp.eq.s32.totalorder %s14, 0
    %p55 = por %p53, %p54
    %s56 = ssub.s32 %s16, %s23
    %p57 = scmp.eq.s32.totalorder %s56, 0
    %s59 = sadd.s32 %s58, 1
    %s60 = scalar_select %p57, %s58, %s59
    %p63 = pneg %p57
    %p64 = scmp.eq.s32.totalorder %s8, 1
    %p65 = por %p63, %p64
    %p66 = scmp.ne.s32.totalorder %s58, %s61
    %p67 = scmp.eq.s32.totalorder %s8, 0
    %p68 = por %p66, %p67
    %p69 = scmp.ne.s32.totalorder %s58, %s61
    %p70 = scmp.eq.s32.totalorder %s13, 1
    %p71 = por %p69, %p70
    %p72 = scmp.ne.s32.totalorder %s61, %s62
    %p73 = scmp.eq.s32.totalorder %s13, 0
    %p74 = por %p72, %p73
    %p75 = scmp.ne.s32.totalorder %s61, %s62
    %p76 = scmp.eq.s32.totalorder %s14, 1
    %p77 = por %p75, %p76
    %p79 = scmp.ne.s32.totalorder %s62, %s78
    %p80 = scmp.eq.s32.totalorder %s14, 0
    %p81 = por %p79, %p80
    %s82 = ssub.s32 %s15, %s27
    %p83 = scmp.eq.s32.totalorder %s82, 0
    %s85 = sadd.s32 %s84, 1
    %s86 = scalar_select %p83, %s84, %s85
    %p89 = pneg %p83
    %p90 = scmp.eq.s32.totalorder %s8, 1
    %p91 = por %p89, %p90
    %p92 = scmp.ne.s32.totalorder %s84, %s87
    %p93 = scmp.eq.s32.totalorder %s8, 0
    %p94 = por %p92, %p93
    %p95 = scmp.ne.s32.totalorder %s84, %s87
    %p96 = scmp.eq.s32.totalorder %s13, 1
    %p97 = por %p95, %p96
    %p98 = scmp.ne.s32.totalorder %s87, %s88
    %p99 = scmp.eq.s32.totalorder %s13, 0
    %p100 = por %p98, %p99
    %p101 = scmp.ne.s32.totalorder %s87, %s88
    %p102 = scmp.eq.s32.totalorder %s14, 1
    %p103 = por %p101, %p102
    %p105 = scmp.ne.s32.totalorder %s88, %s104
    %p106 = scmp.eq.s32.totalorder %s14, 0
    %p107 = por %p105, %p106
    %p108 = scmp.le.s32.totalorder 1, %s8
    %p109 = scmp.lt.s32.totalorder %s8, 3
    %p110 = pnand %p108, %p109
    %p111 = pneg %p110
    // Predicated region
    $region9: #{netd_forward.7} parent=5 // pred_check
      _
    $region10: #{netd_forward.7} parent=5 // pred_check_branch
      %113 = sbr.rel (%p110) target = $region12
    $region11: #{netd_forward.7} parent=5 // pred_region
      %s114 = ssub.s32 %s8, 1
    $region12: #{netd_forward.7} parent=5 // pred_fallthru
      _
    %p115 = scmp.lt.s32.totalorder %s8, 2
    // Predicated region
    $region13: #{netd_forward.7} parent=5 // pred_check
      %p116 = pneg %p115
    $region14: #{netd_forward.7} parent=5 // pred_check_branch
      %118 = sbr.rel (%p116) target = $region16
    $region15: #{netd_forward.7} parent=5 // pred_region
      // Predicated region
      $region17: #{netd_forward.7} parent=15 // pred_check
        %p119 = pneg %p42
      $region18: #{netd_forward.7} parent=15 // pred_check_branch
        %121 = sbr.rel (%p119) target = $region20
      $region19: #{netd_forward.7} parent=15 // pred_region
        %s122 = smul.u32 8, %s16
        %p123 = scmp.lt.s32.totalorder %s15, 0
        %s124 = scalar_select %p123, %s15, 0
        %p125 = scmp.lt.s32.totalorder %s122, 15
        %s126 = scalar_select %p125, %s122, 15
        %s127 = smul.addr %s124, 16
        %s128 = sadd.s32 %s126, %s127
        %s129 = smul.addr %s128, 4
        %s130 = scalar_lea.vmem %s0, %s129
        %s131 = smul.u32 8, %s16
      $region20: #{netd_forward.7} parent=15 // pred_fallthru
        _
      // Predicated region
      $region21: #{netd_forward.7} parent=15 // pred_check
        %p132 = pneg %p68
      $region22: #{netd_forward.7} parent=15 // pred_check_branch
        %134 = sbr.rel (%p132) target = $region24
      $region23: #{netd_forward.7} parent=15 // pred_region
        %s135 = smul.u32 128, %s16
        %p136 = scmp.lt.s32.totalorder %s135, 255
        %s137 = scalar_select %p136, %s135, 255
        %s138 = smul.addr %s137, 4
        %s139 = scalar_lea.vmem %s1, %s138
        %s140 = smul.u32 128, %s16
      $region24: #{netd_forward.7} parent=15 // pred_fallthru
        _
    $region16: #{netd_forward.7} parent=5 // pred_fallthru
      _
    %p141 = scmp.le.s32.totalorder 1, %s8
    %p142 = scmp.lt.s32.totalorder %s8, 3
    %p143 = pnand %p141, %p142
    %p144 = pneg %p143
    // Predicated region
    $region25: #{netd_forward.7} parent=5 // pred_check
      _
    $region26: #{netd_forward.7} parent=5 // pred_check_branch
      %146 = sbr.rel (%p143) target = $region28
    $region27: #{netd_forward.7} parent=5 // pred_region
      %s147 = ssub.s32 %s8, 1
      %s148 = smul.u32 8, %s18
      %p149 = scmp.lt.s32.totalorder %s17, 0
      %s150 = scalar_select %p149, %s17, 0
      %p151 = scmp.lt.s32.totalorder %s148, 15
      %s152 = scalar_select %p151, %s148, 15
      %s153 = smul.addr %s150, 16
      %s154 = sadd.s32 %s152, %s153
      %s155 = smul.addr %s154, 4
      %s156 = scalar_lea.vmem %s0, %s155
      %p157 = pneg %p48
      %p158 = pneg %p45
      %s159 = smul.u32 128, %s18
      %p160 = scmp.lt.s32.totalorder %s159, 255
      %s161 = scalar_select %p160, %s159, 255
      %s162 = smul.addr %s161, 4
      %s163 = scalar_lea.vmem %s1, %s162
      %p164 = pneg %p74
      %p165 = pneg %p71
      %p166 = pneg %p100
      %p167 = pneg %p97
      %p168 = scmp.lt.s32.totalorder %s17, 0
      %s169 = scalar_select %p168, %s17, 0
      %s170 = smul.addr %s169, 8
      %s171 = scalar_lea.vmem %s2, %s170
      %s172 = smul.u32 8, %s18
      %p173 = scmp.lt.s32.totalorder %s17, 0
      %s174 = scalar_select %p173, %s17, 0
      %p175 = scmp.lt.s32.totalorder %s172, 15
      %s176 = scalar_select %p175, %s172, 15
      %s177 = smul.addr %s174, 16
      %s178 = sadd.s32 %s176, %s177
      %s179 = smul.addr %s178, 4
      %s180 = scalar_lea.vmem %s0, %s179
      %s181 = smul.u32 8, %s18
      %s182 = smul.u32 128, %s18
      %p183 = scmp.lt.s32.totalorder %s182, 255
      %s184 = scalar_select %p183, %s182, 255
      %s185 = smul.addr %s184, 4
      %s186 = scalar_lea.vmem %s1, %s185
      %s187 = smul.u32 128, %s18
      %p188 = scmp.lt.s32.totalorder %s17, 0
      %s189 = scalar_select %p188, %s17, 0
      %s190 = smul.addr %s189, 8
      %s191 = scalar_lea.vmem %s2, %s190
      %p193 = scmp.eq.s32.totalorder %s18, 0
      // Predicated region
      $region29: #{netd_forward.7} parent=27 // pred_check
        %p194 = pneg %p193
      $region30: #{netd_forward.7} parent=27 // pred_check_branch
        %196 = sbr.rel (%p194) target = $region32
      $region31: #{netd_forward.7} parent=27 // pred_region
        %197 = vst [vmem:[#allocation2] sm:$0xff] 0.0
      $region32: #{netd_forward.7} parent=27 // pred_fallthru
        _
      %v198 = vld [vmem:[#allocation2] sm:$0xff]
      %v199 = vld [vmem:[%s180] sm:$0xff]
      %v200 = vld [vmem:[%s180 + $0x8] sm:$0xff]
      %v201 = vld [vmem:[%s180 + $0x10] sm:$0xff]
      %v202 = vld [vmem:[%s180 + $0x18] sm:$0xff]
      %v203 = vld [vmem:[%s186] sm:$0xf]
      %v204 = vld [vmem:[%s186 + $0x4] sm:$0xf]
      %v205 = vld [vmem:[%s186 + $0x8] sm:$0xf]
      %v206 = vld [vmem:[%s186 + $0xc] sm:$0xf]
      %v207 = vld [vmem:[%s186 + $0x10] sm:$0xf]
      %v208 = vld [vmem:[%s186 + $0x14] sm:$0xf]
      %v209 = vld [vmem:[%s186 + $0x18] sm:$0xf]
      %v210 = vld [vmem:[%s186 + $0x1c] sm:$0xf]
      %v211 = vld [vmem:[%s186 + $0x20] sm:$0xf]
      %v212 = vld [vmem:[%s186 + $0x24] sm:$0xf]
      %v213 = vld [vmem:[%s186 + $0x28] sm:$0xf]
      %v214 = vld [vmem:[%s186 + $0x2c] sm:$0xf]
      %v215 = vld [vmem:[%s186 + $0x30] sm:$0xf]
      %v216 = vld [vmem:[%s186 + $0x34] sm:$0xf]
      %v217 = vld [vmem:[%s186 + $0x38] sm:$0xf]
      %v218 = vld [vmem:[%s186 + $0x3c] sm:$0xf]
      %v219 = vld [vmem:[%s186 + $0x40] sm:$0xf]
      %v220 = vld [vmem:[%s186 + $0x44] sm:$0xf]
      %v221 = vld [vmem:[%s186 + $0x48] sm:$0xf]
      %v222 = vld [vmem:[%s186 + $0x4c] sm:$0xf]
      %v223 = vld [vmem:[%s186 + $0x50] sm:$0xf]
      %v224 = vld [vmem:[%s186 + $0x54] sm:$0xf]
      %v225 = vld [vmem:[%s186 + $0x58] sm:$0xf]
      %v226 = vld [vmem:[%s186 + $0x5c] sm:$0xf]
      %v227 = vld [vmem:[%s186 + $0x60] sm:$0xf]
      %v228 = vld [vmem:[%s186 + $0x64] sm:$0xf]
      %v229 = vld [vmem:[%s186 + $0x68] sm:$0xf]
      %v230 = vld [vmem:[%s186 + $0x6c] sm:$0xf]
      %v231 = vld [vmem:[%s186 + $0x70] sm:$0xf]
      %v232 = vld [vmem:[%s186 + $0x74] sm:$0xf]
      %v233 = vld [vmem:[%s186 + $0x78] sm:$0xf]
      %v234 = vld [vmem:[%s186 + $0x7c] sm:$0xf]
      %v235 = vld [vmem:[%s186 + $0x80] sm:$0xf]
      %v236 = vld [vmem:[%s186 + $0x84] sm:$0xf]
      %v237 = vld [vmem:[%s186 + $0x88] sm:$0xf]
      %v238 = vld [vmem:[%s186 + $0x8c] sm:$0xf]
      %v239 = vld [vmem:[%s186 + $0x90] sm:$0xf]
      %v240 = vld [vmem:[%s186 + $0x94] sm:$0xf]
      %v241 = vld [vmem:[%s186 + $0x98] sm:$0xf]
      %v242 = vld [vmem:[%s186 + $0x9c] sm:$0xf]
      %v243 = vld [vmem:[%s186 + $0xa0] sm:$0xf]
      %v244 = vld [vmem:[%s186 + $0xa4] sm:$0xf]
      %v245 = vld [vmem:[%s186 + $0xa8] sm:$0xf]
      %v246 = vld [vmem:[%s186 + $0xac] sm:$0xf]
      %v247 = vld [vmem:[%s186 + $0xb0] sm:$0xf]
      %v248 = vld [vmem:[%s186 + $0xb4] sm:$0xf]
      %v249 = vld [vmem:[%s186 + $0xb8] sm:$0xf]
      %v250 = vld [vmem:[%s186 + $0xbc] sm:$0xf]
      %v251 = vld [vmem:[%s186 + $0xc0] sm:$0xf]
      %v252 = vld [vmem:[%s186 + $0xc4] sm:$0xf]
      %v253 = vld [vmem:[%s186 + $0xc8] sm:$0xf]
      %v254 = vld [vmem:[%s186 + $0xcc] sm:$0xf]
      %v255 = vld [vmem:[%s186 + $0xd0] sm:$0xf]
      %v256 = vld [vmem:[%s186 + $0xd4] sm:$0xf]
      %v257 = vld [vmem:[%s186 + $0xd8] sm:$0xf]
      %v258 = vld [vmem:[%s186 + $0xdc] sm:$0xf]
      %v259 = vld [vmem:[%s186 + $0xe0] sm:$0xf]
      %v260 = vld [vmem:[%s186 + $0xe4] sm:$0xf]
      %v261 = vld [vmem:[%s186 + $0xe8] sm:$0xf]
      %v262 = vld [vmem:[%s186 + $0xec] sm:$0xf]
      %v263 = vld [vmem:[%s186 + $0xf0] sm:$0xf]
      %v264 = vld [vmem:[%s186 + $0xf4] sm:$0xf]
      %v265 = vld [vmem:[%s186 + $0xf8] sm:$0xf]
      %v266 = vld [vmem:[%s186 + $0xfc] sm:$0xf]
      %v267 = vld [vmem:[%s186 + $0x100] sm:$0xf]
      %v268 = vld [vmem:[%s186 + $0x104] sm:$0xf]
      %v269 = vld [vmem:[%s186 + $0x108] sm:$0xf]
      %v270 = vld [vmem:[%s186 + $0x10c] sm:$0xf]
      %v271 = vld [vmem:[%s186 + $0x110] sm:$0xf]
      %v272 = vld [vmem:[%s186 + $0x114] sm:$0xf]
      %v273 = vld [vmem:[%s186 + $0x118] sm:$0xf]
      %v274 = vld [vmem:[%s186 + $0x11c] sm:$0xf]
      %v275 = vld [vmem:[%s186 + $0x120] sm:$0xf]
      %v276 = vld [vmem:[%s186 + $0x124] sm:$0xf]
      %v277 = vld [vmem:[%s186 + $0x128] sm:$0xf]
      %v278 = vld [vmem:[%s186 + $0x12c] sm:$0xf]
      %v279 = vld [vmem:[%s186 + $0x130] sm:$0xf]
      %v280 = vld [vmem:[%s186 + $0x134] sm:$0xf]
      %v281 = vld [vmem:[%s186 + $0x138] sm:$0xf]
      %v282 = vld [vmem:[%s186 + $0x13c] sm:$0xf]
      %v283 = vld [vmem:[%s186 + $0x140] sm:$0xf]
      %v284 = vld [vmem:[%s186 + $0x144] sm:$0xf]
      %v285 = vld [vmem:[%s186 + $0x148] sm:$0xf]
      %v286 = vld [vmem:[%s186 + $0x14c] sm:$0xf]
      %v287 = vld [vmem:[%s186 + $0x150] sm:$0xf]
      %v288 = vld [vmem:[%s186 + $0x154] sm:$0xf]
      %v289 = vld [vmem:[%s186 + $0x158] sm:$0xf]
      %v290 = vld [vmem:[%s186 + $0x15c] sm:$0xf]
      %v291 = vld [vmem:[%s186 + $0x160] sm:$0xf]
      %v292 = vld [vmem:[%s186 + $0x164] sm:$0xf]
      %v293 = vld [vmem:[%s186 + $0x168] sm:$0xf]
      %v294 = vld [vmem:[%s186 + $0x16c] sm:$0xf]
      %v295 = vld [vmem:[%s186 + $0x170] sm:$0xf]
      %v296 = vld [vmem:[%s186 + $0x174] sm:$0xf]
      %v297 = vld [vmem:[%s186 + $0x178] sm:$0xf]
      %v298 = vld [vmem:[%s186 + $0x17c] sm:$0xf]
      %v299 = vld [vmem:[%s186 + $0x180] sm:$0xf]
      %v300 = vld [vmem:[%s186 + $0x184] sm:$0xf]
      %v301 = vld [vmem:[%s186 + $0x188] sm:$0xf]
      %v302 = vld [vmem:[%s186 + $0x18c] sm:$0xf]
      %v303 = vld [vmem:[%s186 + $0x190] sm:$0xf]
      %v304 = vld [vmem:[%s186 + $0x194] sm:$0xf]
      %v305 = vld [vmem:[%s186 + $0x198] sm:$0xf]
      %v306 = vld [vmem:[%s186 + $0x19c] sm:$0xf]
      %v307 = vld [vmem:[%s186 + $0x1a0] sm:$0xf]
      %v308 = vld [vmem:[%s186 + $0x1a4] sm:$0xf]
      %v309 = vld [vmem:[%s186 + $0x1a8] sm:$0xf]
      %v310 = vld [vmem:[%s186 + $0x1ac] sm:$0xf]
      %v311 = vld [vmem:[%s186 + $0x1b0] sm:$0xf]
      %v312 = vld [vmem:[%s186 + $0x1b4] sm:$0xf]
      %v313 = vld [vmem:[%s186 + $0x1b8] sm:$0xf]
      %v314 = vld [vmem:[%s186 + $0x1bc] sm:$0xf]
      %v315 = vld [vmem:[%s186 + $0x1c0] sm:$0xf]
      %v316 = vld [vmem:[%s186 + $0x1c4] sm:$0xf]
      %v317 = vld [vmem:[%s186 + $0x1c8] sm:$0xf]
      %v318 = vld [vmem:[%s186 + $0x1cc] sm:$0xf]
      %v319 = vld [vmem:[%s186 + $0x1d0] sm:$0xf]
      %v320 = vld [vmem:[%s186 + $0x1d4] sm:$0xf]
      %v321 = vld [vmem:[%s186 + $0x1d8] sm:$0xf]
      %v322 = vld [vmem:[%s186 + $0x1dc] sm:$0xf]
      %v323 = vld [vmem:[%s186 + $0x1e0] sm:$0xf]
      %v324 = vld [vmem:[%s186 + $0x1e4] sm:$0xf]
      %v325 = vld [vmem:[%s186 + $0x1e8] sm:$0xf]
      %v326 = vld [vmem:[%s186 + $0x1ec] sm:$0xf]
      %v327 = vld [vmem:[%s186 + $0x1f0] sm:$0xf]
      %v328 = vld [vmem:[%s186 + $0x1f4] sm:$0xf]
      %v329 = vld [vmem:[%s186 + $0x1f8] sm:$0xf]
      %v330 = vld [vmem:[%s186 + $0x1fc] sm:$0xf]
      %v335 = vunpack.c.l.b16 %v199
      %v336 = vunpack.c.h.b16 %v199
      %v337 = vunpack.c.l.b16 %v200
      %v338 = vunpack.c.h.b16 %v200
      %v339 = vunpack.c.l.b16 %v201
      %v340 = vunpack.c.h.b16 %v201
      %v341 = vunpack.c.l.b16 %v202
      %v342 = vunpack.c.h.b16 %v202
      %v343 = vpack.c.b16 %v335, %v335
      %v344 = vpack.c.b16 %v336, %v336
      %v345 = vpack.c.b16 %v337, %v337
      %v346 = vpack.c.b16 %v338, %v338
      %v347 = vpack.c.b16 %v339, %v339
      %v348 = vpack.c.b16 %v340, %v340
      %v349 = vpack.c.b16 %v341, %v341
      %v350 = vpack.c.b16 %v342, %v342
      %v487 = vunpack.c.l.b16 %v203
      %v488 = vunpack.c.l.b16 %v204
      %v489 = vunpack.c.l.b16 %v205
      %v490 = vunpack.c.l.b16 %v206
      %v491 = vunpack.c.l.b16 %v207
      %v492 = vunpack.c.l.b16 %v208
      %v493 = vunpack.c.l.b16 %v209
      %v494 = vunpack.c.l.b16 %v210
      %v495 = vunpack.c.l.b16 %v211
      %v496 = vunpack.c.l.b16 %v212
      %v497 = vunpack.c.l.b16 %v213
      %v498 = vunpack.c.l.b16 %v214
      %v499 = vunpack.c.l.b16 %v215
      %v500 = vunpack.c.l.b16 %v216
      %v501 = vunpack.c.l.b16 %v217
      %v502 = vunpack.c.l.b16 %v218
      %v503 = vunpack.c.l.b16 %v219
      %v504 = vunpack.c.l.b16 %v220
      %v505 = vunpack.c.l.b16 %v221
      %v506 = vunpack.c.l.b16 %v222
      %v507 = vunpack.c.l.b16 %v223
      %v508 = vunpack.c.l.b16 %v224
      %v509 = vunpack.c.l.b16 %v225
      %v510 = vunpack.c.l.b16 %v226
      %v511 = vunpack.c.l.b16 %v227
      %v512 = vunpack.c.l.b16 %v228
      %v513 = vunpack.c.l.b16 %v229
      %v514 = vunpack.c.l.b16 %v230
      %v515 = vunpack.c.l.b16 %v231
      %v516 = vunpack.c.l.b16 %v232
      %v517 = vunpack.c.l.b16 %v233
      %v518 = vunpack.c.l.b16 %v234
      %v519 = vunpack.c.l.b16 %v235
      %v520 = vunpack.c.l.b16 %v236
      %v521 = vunpack.c.l.b16 %v237
      %v522 = vunpack.c.l.b16 %v238
      %v523 = vunpack.c.l.b16 %v239
      %v524 = vunpack.c.l.b16 %v240
      %v525 = vunpack.c.l.b16 %v241
      %v526 = vunpack.c.l.b16 %v242
      %v527 = vunpack.c.l.b16 %v243
      %v528 = vunpack.c.l.b16 %v244
      %v529 = vunpack.c.l.b16 %v245
      %v530 = vunpack.c.l.b16 %v246
      %v531 = vunpack.c.l.b16 %v247
      %v532 = vunpack.c.l.b16 %v248
      %v533 = vunpack.c.l.b16 %v249
      %v534 = vunpack.c.l.b16 %v250
      %v535 = vunpack.c.l.b16 %v251
      %v536 = vunpack.c.l.b16 %v252
      %v537 = vunpack.c.l.b16 %v253
      %v538 = vunpack.c.l.b16 %v254
      %v539 = vunpack.c.l.b16 %v255
      %v540 = vunpack.c.l.b16 %v256
      %v541 = vunpack.c.l.b16 %v257
      %v542 = vunpack.c.l.b16 %v258
      %v543 = vunpack.c.l.b16 %v259
      %v544 = vunpack.c.l.b16 %v260
      %v545 = vunpack.c.l.b16 %v261
      %v546 = vunpack.c.l.b16 %v262
      %v547 = vunpack.c.l.b16 %v263
      %v548 = vunpack.c.l.b16 %v264
      %v549 = vunpack.c.l.b16 %v265
      %v550 = vunpack.c.l.b16 %v266
      %v551 = vunpack.c.l.b16 %v267
      %v552 = vunpack.c.l.b16 %v268
      %v553 = vunpack.c.l.b16 %v269
      %v554 = vunpack.c.l.b16 %v270
      %v555 = vunpack.c.l.b16 %v271
      %v556 = vunpack.c.l.b16 %v272
      %v557 = vunpack.c.l.b16 %v273
      %v558 = vunpack.c.l.b16 %v274
      %v559 = vunpack.c.l.b16 %v275
      %v560 = vunpack.c.l.b16 %v276
      %v561 = vunpack.c.l.b16 %v277
      %v562 = vunpack.c.l.b16 %v278
      %v563 = vunpack.c.l.b16 %v279
      %v564 = vunpack.c.l.b16 %v280
      %v565 = vunpack.c.l.b16 %v281
      %v566 = vunpack.c.l.b16 %v282
      %v567 = vunpack.c.l.b16 %v283
      %v568 = vunpack.c.l.b16 %v284
      %v569 = vunpack.c.l.b16 %v285
      %v570 = vunpack.c.l.b16 %v286
      %v571 = vunpack.c.l.b16 %v287
      %v572 = vunpack.c.l.b16 %v288
      %v573 = vunpack.c.l.b16 %v289
      %v574 = vunpack.c.l.b16 %v290
      %v575 = vunpack.c.l.b16 %v291
      %v576 = vunpack.c.l.b16 %v292
      %v577 = vunpack.c.l.b16 %v293
      %v578 = vunpack.c.l.b16 %v294
      %v579 = vunpack.c.l.b16 %v295
      %v580 = vunpack.c.l.b16 %v296
      %v581 = vunpack.c.l.b16 %v297
      %v582 = vunpack.c.l.b16 %v298
      %v583 = vunpack.c.l.b16 %v299
      %v584 = vunpack.c.l.b16 %v300
      %v585 = vunpack.c.l.b16 %v301
      %v586 = vunpack.c.l.b16 %v302
      %v587 = vunpack.c.l.b16 %v303
      %v588 = vunpack.c.l.b16 %v304
      %v589 = vunpack.c.l.b16 %v305
      %v590 = vunpack.c.l.b16 %v306
      %v591 = vunpack.c.l.b16 %v307
      %v592 = vunpack.c.l.b16 %v308
      %v593 = vunpack.c.l.b16 %v309
      %v594 = vunpack.c.l.b16 %v310
      %v595 = vunpack.c.l.b16 %v311
      %v596 = vunpack.c.l.b16 %v312
      %v597 = vunpack.c.l.b16 %v313
      %v598 = vunpack.c.l.b16 %v314
      %v599 = vunpack.c.l.b16 %v315
      %v600 = vunpack.c.l.b16 %v316
      %v601 = vunpack.c.l.b16 %v317
      %v602 = vunpack.c.l.b16 %v318
      %v603 = vunpack.c.l.b16 %v319
      %v604 = vunpack.c.l.b16 %v320
      %v605 = vunpack.c.l.b16 %v321
      %v606 = vunpack.c.l.b16 %v322
      %v607 = vunpack.c.l.b16 %v323
      %v608 = vunpack.c.l.b16 %v324
      %v609 = vunpack.c.l.b16 %v325
      %v610 = vunpack.c.l.b16 %v326
      %v611 = vunpack.c.l.b16 %v327
      %v612 = vunpack.c.l.b16 %v328
      %v613 = vunpack.c.l.b16 %v329
      %v614 = vunpack.c.l.b16 %v330
      %v615 = vpack.c.b16 %v488, %v487
      %v616 = vpack.c.b16 %v490, %v489
      %v617 = vpack.c.b16 %v492, %v491
      %v618 = vpack.c.b16 %v494, %v493
      %v619 = vpack.c.b16 %v496, %v495
      %v620 = vpack.c.b16 %v498, %v497
      %v621 = vpack.c.b16 %v500, %v499
      %v622 = vpack.c.b16 %v502, %v501
      %v623 = vpack.c.b16 %v504, %v503
      %v624 = vpack.c.b16 %v506, %v505
      %v625 = vpack.c.b16 %v508, %v507
      %v626 = vpack.c.b16 %v510, %v509
      %v627 = vpack.c.b16 %v512, %v511
      %v628 = vpack.c.b16 %v514, %v513
      %v629 = vpack.c.b16 %v516, %v515
      %v630 = vpack.c.b16 %v518, %v517
      %v631 = vpack.c.b16 %v520, %v519
      %v632 = vpack.c.b16 %v522, %v521
      %v633 = vpack.c.b16 %v524, %v523
      %v634 = vpack.c.b16 %v526, %v525
      %v635 = vpack.c.b16 %v528, %v527
      %v636 = vpack.c.b16 %v530, %v529
      %v637 = vpack.c.b16 %v532, %v531
      %v638 = vpack.c.b16 %v534, %v533
      %v639 = vpack.c.b16 %v536, %v535
      %v640 = vpack.c.b16 %v538, %v537
      %v641 = vpack.c.b16 %v540, %v539
      %v642 = vpack.c.b16 %v542, %v541
      %v643 = vpack.c.b16 %v544, %v543
      %v644 = vpack.c.b16 %v546, %v545
      %v645 = vpack.c.b16 %v548, %v547
      %v646 = vpack.c.b16 %v550, %v549
      %v647 = vpack.c.b16 %v552, %v551
      %v648 = vpack.c.b16 %v554, %v553
      %v649 = vpack.c.b16 %v556, %v555
      %v650 = vpack.c.b16 %v558, %v557
      %v651 = vpack.c.b16 %v560, %v559
      %v652 = vpack.c.b16 %v562, %v561
      %v653 = vpack.c.b16 %v564, %v563
      %v654 = vpack.c.b16 %v566, %v565
      %v655 = vpack.c.b16 %v568, %v567
      %v656 = vpack.c.b16 %v570, %v569
      %v657 = vpack.c.b16 %v572, %v571
      %v658 = vpack.c.b16 %v574, %v573
      %v659 = vpack.c.b16 %v576, %v575
      %v660 = vpack.c.b16 %v578, %v577
      %v661 = vpack.c.b16 %v580, %v579
      %v662 = vpack.c.b16 %v582, %v581
      %v663 = vpack.c.b16 %v584, %v583
      %v664 = vpack.c.b16 %v586, %v585
      %v665 = vpack.c.b16 %v588, %v587
      %v666 = vpack.c.b16 %v590, %v589
      %v667 = vpack.c.b16 %v592, %v591
      %v668 = vpack.c.b16 %v594, %v593
      %v669 = vpack.c.b16 %v596, %v595
      %v670 = vpack.c.b16 %v598, %v597
      %v671 = vpack.c.b16 %v600, %v599
      %v672 = vpack.c.b16 %v602, %v601
      %v673 = vpack.c.b16 %v604, %v603
      %v674 = vpack.c.b16 %v606, %v605
      %v675 = vpack.c.b16 %v608, %v607
      %v676 = vpack.c.b16 %v610, %v609
      %v677 = vpack.c.b16 %v612, %v611
      %v678 = vpack.c.b16 %v614, %v613
      %743 = vmatprep.subr.bf16.mxu0 0
      %744 = vmatpush1.bf16.msra.mxu0 %v615
      %745 = vmatprep.subr.bf16.mxu0 0
      %746 = vmatpush1.bf16.msra.mxu0 %v616
      %747 = vmatprep.subr.bf16.mxu0 0
      %748 = vmatpush1.bf16.msra.mxu0 %v617
      %749 = vmatprep.subr.bf16.mxu0 0
      %750 = vmatpush1.bf16.msra.mxu0 %v618
      %751 = vmatprep.subr.bf16.mxu0 0
      %752 = vmatpush1.bf16.msra.mxu0 %v619
      %753 = vmatprep.subr.bf16.mxu0 0
      %754 = vmatpush1.bf16.msra.mxu0 %v620
      %755 = vmatprep.subr.bf16.mxu0 0
      %756 = vmatpush1.bf16.msra.mxu0 %v621
      %757 = vmatprep.subr.bf16.mxu0 0
      %758 = vmatpush1.bf16.msra.mxu0 %v622
      %759 = vmatprep.subr.bf16.mxu0 0
      %760 = vmatpush1.bf16.msra.mxu0 %v623
      %761 = vmatprep.subr.bf16.mxu0 0
      %762 = vmatpush1.bf16.msra.mxu0 %v624
      %763 = vmatprep.subr.bf16.mxu0 0
      %764 = vmatpush1.bf16.msra.mxu0 %v625
      %765 = vmatprep.subr.bf16.mxu0 0
      %766 = vmatpush1.bf16.msra.mxu0 %v626
      %767 = vmatprep.subr.bf16.mxu0 0
      %768 = vmatpush1.bf16.msra.mxu0 %v627
      %769 = vmatprep.subr.bf16.mxu0 0
      %770 = vmatpush1.bf16.msra.mxu0 %v628
      %771 = vmatprep.subr.bf16.mxu0 0
      %772 = vmatpush1.bf16.msra.mxu0 %v629
      %773 = vmatprep.subr.bf16.mxu0 0
      %774 = vmatpush1.bf16.msra.mxu0 %v630
      %775 = vmatprep.mubr.bf16.mxu0 %v344
      %776 = vmatmul.mubr.bf16.gmra.mrb[0].mxu0 %v343
      %v777 = vpop.f32.mrb[0].mxu0
      %v778 = vadd.f32 0.0, %v777
      %v779 = vpop.f32.mrb[0].mxu0
      %v780 = vpop.f32.mrb[0].mxu0
      %v781 = vpop.f32.mrb[0].mxu0
      %782 = vdwg.mxu0
      %783 = vmatprep.subr.bf16.mxu0 0
      %784 = vmatpush1.bf16.msra.mxu0 %v631
      %785 = vmatprep.subr.bf16.mxu0 0
      %786 = vmatpush1.bf16.msra.mxu0 %v632
      %787 = vmatprep.subr.bf16.mxu0 0
      %788 = vmatpush1.bf16.msra.mxu0 %v633
      %789 = vmatprep.subr.bf16.mxu0 0
      %790 = vmatpush1.bf16.msra.mxu0 %v634
      %791 = vmatprep.subr.bf16.mxu0 0
      %792 = vmatpush1.bf16.msra.mxu0 %v635
      %793 = vmatprep.subr.bf16.mxu0 0
      %794 = vmatpush1.bf16.msra.mxu0 %v636
      %795 = vmatprep.subr.bf16.mxu0 0
      %796 = vmatpush1.bf16.msra.mxu0 %v637
      %797 = vmatprep.subr.bf16.mxu0 0
      %798 = vmatpush1.bf16.msra.mxu0 %v638
      %799 = vmatprep.subr.bf16.mxu0 0
      %800 = vmatpush1.bf16.msra.mxu0 %v639
      %801 = vmatprep.subr.bf16.mxu0 0
      %802 = vmatpush1.bf16.msra.mxu0 %v640
      %803 = vmatprep.subr.bf16.mxu0 0
      %804 = vmatpush1.bf16.msra.mxu0 %v641
      %805 = vmatprep.subr.bf16.mxu0 0
      %806 = vmatpush1.bf16.msra.mxu0 %v642
      %807 = vmatprep.subr.bf16.mxu0 0
      %808 = vmatpush1.bf16.msra.mxu0 %v643
      %809 = vmatprep.subr.bf16.mxu0 0
      %810 = vmatpush1.bf16.msra.mxu0 %v644
      %811 = vmatprep.subr.bf16.mxu0 0
      %812 = vmatpush1.bf16.msra.mxu0 %v645
      %813 = vmatprep.subr.bf16.mxu0 0
      %814 = vmatpush1.bf16.msra.mxu0 %v646
      %815 = vmatprep.mubr.bf16.mxu0 %v346
      %816 = vmatmul.mubr.bf16.gmra.mrb[0].mxu0 %v345
      %v817 = vpop.f32.mrb[0].mxu0
      %v818 = vadd.f32 %v778, %v817
      %v819 = vpop.f32.mrb[0].mxu0
      %v820 = vpop.f32.mrb[0].mxu0
      %v821 = vpop.f32.mrb[0].mxu0
      %822 = vdwg.mxu0
      %823 = vmatprep.subr.bf16.mxu0 0
      %824 = vmatpush1.bf16.msra.mxu0 %v647
      %825 = vmatprep.subr.bf16.mxu0 0
      %826 = vmatpush1.bf16.msra.mxu0 %v648
      %827 = vmatprep.subr.bf16.mxu0 0
      %828 = vmatpush1.bf16.msra.mxu0 %v649
      %829 = vmatprep.subr.bf16.mxu0 0
      %830 = vmatpush1.bf16.msra.mxu0 %v650
      %831 = vmatprep.subr.bf16.mxu0 0
      %832 = vmatpush1.bf16.msra.mxu0 %v651
      %833 = vmatprep.subr.bf16.mxu0 0
      %834 = vmatpush1.bf16.msra.mxu0 %v652
      %835 = vmatprep.subr.bf16.mxu0 0
      %836 = vmatpush1.bf16.msra.mxu0 %v653
      %837 = vmatprep.subr.bf16.mxu0 0
      %838 = vmatpush1.bf16.msra.mxu0 %v654
      %839 = vmatprep.subr.bf16.mxu0 0
      %840 = vmatpush1.bf16.msra.mxu0 %v655
      %841 = vmatprep.subr.bf16.mxu0 0
      %842 = vmatpush1.bf16.msra.mxu0 %v656
      %843 = vmatprep.subr.bf16.mxu0 0
      %844 = vmatpush1.bf16.msra.mxu0 %v657
      %845 = vmatprep.subr.bf16.mxu0 0
      %846 = vmatpush1.bf16.msra.mxu0 %v658
      %847 = vmatprep.subr.bf16.mxu0 0
      %848 = vmatpush1.bf16.msra.mxu0 %v659
      %849 = vmatprep.subr.bf16.mxu0 0
      %850 = vmatpush1.bf16.msra.mxu0 %v660
      %851 = vmatprep.subr.bf16.mxu0 0
      %852 = vmatpush1.bf16.msra.mxu0 %v661
      %853 = vmatprep.subr.bf16.mxu0 0
      %854 = vmatpush1.bf16.msra.mxu0 %v662
      %855 = vmatprep.mubr.bf16.mxu0 %v348
      %856 = vmatmul.mubr.bf16.gmra.mrb[0].mxu0 %v347
      %v857 = vpop.f32.mrb[0].mxu0
      %v858 = vadd.f32 %v818, %v857
      %v859 = vpop.f32.mrb[0].mxu0
      %v860 = vpop.f32.mrb[0].mxu0
      %v861 = vpop.f32.mrb[0].mxu0
      %862 = vdwg.mxu0
      %863 = vmatprep.subr.bf16.mxu0 0
      %864 = vmatpush1.bf16.msra.mxu0 %v663
      %865 = vmatprep.subr.bf16.mxu0 0
      %866 = vmatpush1.bf16.msra.mxu0 %v664
      %867 = vmatprep.subr.bf16.mxu0 0
      %868 = vmatpush1.bf16.msra.mxu0 %v665
      %869 = vmatprep.subr.bf16.mxu0 0
      %870 = vmatpush1.bf16.msra.mxu0 %v666
      %871 = vmatprep.subr.bf16.mxu0 0
      %872 = vmatpush1.bf16.msra.mxu0 %v667
      %873 = vmatprep.subr.bf16.mxu0 0
      %874 = vmatpush1.bf16.msra.mxu0 %v668
      %875 = vmatprep.subr.bf16.mxu0 0
      %876 = vmatpush1.bf16.msra.mxu0 %v669
      %877 = vmatprep.subr.bf16.mxu0 0
      %878 = vmatpush1.bf16.msra.mxu0 %v670
      %879 = vmatprep.subr.bf16.mxu0 0
      %880 = vmatpush1.bf16.msra.mxu0 %v671
      %881 = vmatprep.subr.bf16.mxu0 0
      %882 = vmatpush1.bf16.msra.mxu0 %v672
      %883 = vmatprep.subr.bf16.mxu0 0
      %884 = vmatpush1.bf16.msra.mxu0 %v673
      %885 = vmatprep.subr.bf16.mxu0 0
      %886 = vmatpush1.bf16.msra.mxu0 %v674
      %887 = vmatprep.subr.bf16.mxu0 0
      %888 = vmatpush1.bf16.msra.mxu0 %v675
      %889 = vmatprep.subr.bf16.mxu0 0
      %890 = vmatpush1.bf16.msra.mxu0 %v676
      %891 = vmatprep.subr.bf16.mxu0 0
      %892 = vmatpush1.bf16.msra.mxu0 %v677
      %893 = vmatprep.subr.bf16.mxu0 0
      %894 = vmatpush1.bf16.msra.mxu0 %v678
      %895 = vmatprep.mubr.bf16.mxu0 %v350
      %896 = vmatmul.mubr.bf16.gmra.mrb[0].mxu0 %v349
      %v897 = vpop.f32.mrb[0].mxu0
      %v898 = vadd.f32 %v858, %v897
      %v899 = vpop.f32.mrb[0].mxu0
      %v900 = vpop.f32.mrb[0].mxu0
      %v901 = vpop.f32.mrb[0].mxu0
      %902 = vdwg.mxu0
      %v903 = vadd.f32 %v198, %v898
      %904 = vst [vmem:[#allocation2] sm:$0xff] %v903
      %p905 = scmp.eq.s32.totalorder %s18, 1
      // Predicated region
      $region33: #{netd_forward.7} parent=27 // pred_check
        %p906 = pneg %p905
      $region34: #{netd_forward.7} parent=27 // pred_check_branch
        %908 = sbr.rel (%p906) target = $region36
      $region35: #{netd_forward.7} parent=27 // pred_region
        %v909 = vld [vmem:[#allocation2] sm:$0xff]
        %v910 = vsub.f32 0.0, %v909
        %v911 = vmul.f32 %v910, 1.442695
        %v912 = vpow.pop %v911
        %v913 = vadd.f32 %v912, 1.0
        %v914 = vrcp.pop %v913
        %v915 = vmul.f32 1.0, %v914
        %916 = vst [vmem:[%s191] sm:$0xff] %v915
      $region36: #{netd_forward.7} parent=27 // pred_fallthru
        _
      %p917 = scmp.lt.s32.totalorder %s17, 0
      %s918 = scalar_select %p917, %s17, 0
      %s919 = smul.addr %s918, 8
      %s920 = scalar_lea.vmem %s2, %s919
      // Predicated region
      $region37: #{netd_forward.7} parent=27 // pred_check
        %p921 = pneg %p97
      $region38: #{netd_forward.7} parent=27 // pred_check_branch
        %923 = sbr.rel (%p921) target = $region40
      $region39: #{netd_forward.7} parent=27 // pred_region
        _
      $region40: #{netd_forward.7} parent=27 // pred_fallthru
        _
      // Predicated region
      $region41: #{netd_forward.7} parent=27 // pred_check
        %p924 = pneg %p97
      $region42: #{netd_forward.7} parent=27 // pred_check_branch
        %926 = sbr.rel (%p924) target = $region44
      $region43: #{netd_forward.7} parent=27 // pred_region
        %p927 = scmp.lt.s32.totalorder %s17, 0
        %s928 = scalar_select %p927, %s17, 0
        %s929 = smul.addr %s928, 8
        %s930 = scalar_lea.vmem %s2, %s929
      $region44: #{netd_forward.7} parent=27 // pred_fallthru
        _
    $region28: #{netd_forward.7} parent=5 // pred_fallthru
      _
    %p931 = scmp.le.s32.totalorder 2, %s8
    // Predicated region
    $region45: #{netd_forward.7} parent=5 // pred_check
      %p932 = pneg %p931
    $region46: #{netd_forward.7} parent=5 // pred_check_branch
      %934 = sbr.rel (%p932) target = $region48
    $region47: #{netd_forward.7} parent=5 // pred_region
      %s935 = ssub.s32 %s8, 2
    $region48: #{netd_forward.7} parent=5 // pred_fallthru
      _
  $region6: #{netd_forward.7} parent=0 // loop_footer
    %s12 = sadd.s32 1, %s8
  $region7: #{netd_forward.7} parent=0 // loop_footer_branch
    %7 = sbr.rel target = $region3
  $region8: #{netd_forward.7} parent=0 // loop_exit
    _

// kernel: netd_forward.5
$region0: #{netd_forward.5}
  #allocation0 [shape = 'u32[]', space=smem, size = 0x4, offset = 0x4, fixed_abs, tag = 'smem constant byte address 0x4 - core index']
  #allocation1 [shape = 'u32[144,128]{1,0:T(1,128)}', space=vmem, size = 0x12000, scoped, tag = 'internal scratch']
  #allocation2 [shape = 'f32[32,128]{1,0:T(8,128)}', space=vmem, size = 0x4000, scoped, tag = 'scratch operand']
  %s0 = inlined_call_operand.vmem [shape: bf16[32,2048], index: 0, kind: input, shape index: {}]
  %s1 = inlined_call_operand.vmem [shape: bf16[2048,128], index: 1, kind: input, shape index: {}]
  %s2 = inlined_call_operand.vmem [shape: f32[32,128], index: 2, kind: output, shape index: {0}]
  %s3 = inlined_call_operand.vmem [shape: f32[8,128], index: 3, kind: output, shape index: {1}]
  %4 = xla_tuple %s2, %s3
  %s5 = sld [smem:[#allocation0]]
  $region80: #{netd_forward.5} parent=0
    _
  %s7 = ssub.s32 1, %s5
  %s8 = scalar_select 0, %s7, %s5
  $region1: #{netd_forward.5} parent=0
    #allocation3 [shape = 'u8[131072]{0}', space=vmem, size = 0x20000, scoped, tag = 'input window, operand 0']
    loop: start=0, step=1, limit=4
    $region2: #{netd_forward.5} parent=1 // loop_pre_header
      _
    $region3: #{netd_forward.5} parent=1 // loop_header
      %s10 = sphi 0, %s14
      %p11 = scmp.ge.s32.totalorder %s10, 4
      %s17 = sphi 0, %s29
      %s18 = sphi 0, %s25
      %s19 = sphi 0, %s17
      %s20 = sphi 0, %s18
      %s21 = sphi 0, %s19
      %s22 = sphi 0, %s20
      %s34 = sphi 0, %s36
      %s37 = sphi 0, %s34
      %s38 = sphi 0, %s37
      %s54 = sphi 0, %s38
      %s60 = sphi 0, %s62
      %s63 = sphi 0, %s60
      %s64 = sphi 0, %s63
      %s80 = sphi 0, %s64
      %s86 = sphi 0, %s88
      %s89 = sphi 0, %s86
      %s90 = sphi 0, %s89
      %s106 = sphi 0, %s90
      %s112 = sphi 0, %s114
      %s115 = sphi 0, %s112
      %s116 = sphi 0, %s115
      %s132 = sphi 0, %s116
    $region4: #{netd_forward.5} parent=1 // loop_header_branch
      %13 = sbr.rel (%p11) target = $region8
    $region5: #{netd_forward.5} parent=1 // loop_body
      %s15 = ssub.s32 %s10, 1
      %s16 = ssub.s32 %s10, 2
      %s23 = sadd.s32 1, %s18
      %p24 = scmp.ge.s32.totalorder %s23, 2
      %s25 = scalar_select %p24, 0, %s23
      %s26 = sadd.s32 1, %s17
      %s27 = scalar_select %p24, %s26, %s17
      %p28 = scmp.ge.s32.totalorder %s27, 1
      %s29 = scalar_select %p28, 0, %s27
      %s30 = ssub.s32 %s17, %s29
      %s31 = ssub.s32 %s18, %s25
      %s32 = sor.u32 %s30, %s31
      %p33 = scmp.eq.s32.totalorder %s32, 0
      %s35 = sadd.s32 %s34, 1
      %s36 = scalar_select %p33, %s34, %s35
      %p39 = pneg %p33
      %p40 = scmp.eq.s32.totalorder %s10, 1
      %p41 = por %p39, %p40
      %p42 = scmp.ne.s32.totalorder %s34, %s37
      %p43 = scmp.eq.s32.totalorder %s10, 0
      %p44 = por %p42, %p43
      %p45 = scmp.ne.s32.totalorder %s34, %s37
      %p46 = scmp.eq.s32.totalorder %s15, 1
      %p47 = por %p45, %p46
      %p48 = scmp.ne.s32.totalorder %s37, %s38
      %p49 = scmp.eq.s32.totalorder %s15, 0
      %p50 = por %p48, %p49
      %p51 = scmp.ne.s32.totalorder %s37, %s38
      %p52 = scmp.eq.s32.totalorder %s16, 1
      %p53 = por %p51, %p52
      %p55 = scmp.ne.s32.totalorder %s38, %s54
      %p56 = scmp.eq.s32.totalorder %s16, 0
      %p57 = por %p55, %p56
      %s58 = ssub.s32 %s18, %s25
      %p59 = scmp.eq.s32.totalorder %s58, 0
      %s61 = sadd.s32 %s60, 1
      %s62 = scalar_select %p59, %s60, %s61
      %p65 = pneg %p59
      %p66 = scmp.eq.s32.totalorder %s10, 1
      %p67 = por %p65, %p66
      %p68 = scmp.ne.s32.totalorder %s60, %s63
      %p69 = scmp.eq.s32.totalorder %s10, 0
      %p70 = por %p68, %p69
      %p71 = scmp.ne.s32.totalorder %s60, %s63
      %p72 = scmp.eq.s32.totalorder %s15, 1
      %p73 = por %p71, %p72
      %p74 = scmp.ne.s32.totalorder %s63, %s64
      %p75 = scmp.eq.s32.totalorder %s15, 0
      %p76 = por %p74, %p75
      %p77 = scmp.ne.s32.totalorder %s63, %s64
      %p78 = scmp.eq.s32.totalorder %s16, 1
      %p79 = por %p77, %p78
      %p81 = scmp.ne.s32.totalorder %s64, %s80
      %p82 = scmp.eq.s32.totalorder %s16, 0
      %p83 = por %p81, %p82
      %s84 = ssub.s32 %s17, %s29
      %p85 = scmp.eq.s32.totalorder %s84, 0
      %s87 = sadd.s32 %s86, 1
      %s88 = scalar_select %p85, %s86, %s87
      %p91 = pneg %p85
      %p92 = scmp.eq.s32.totalorder %s10, 1
      %p93 = por %p91, %p92
      %p94 = scmp.ne.s32.totalorder %s86, %s89
      %p95 = scmp.eq.s32.totalorder %s10, 0
      %p96 = por %p94, %p95
      %p97 = scmp.ne.s32.totalorder %s86, %s89
      %p98 = scmp.eq.s32.totalorder %s15, 1
      %p99 = por %p97, %p98
      %p100 = scmp.ne.s32.totalorder %s89, %s90
      %p101 = scmp.eq.s32.totalorder %s15, 0
      %p102 = por %p100, %p101
      %p103 = scmp.ne.s32.totalorder %s89, %s90
      %p104 = scmp.eq.s32.totalorder %s16, 1
      %p105 = por %p103, %p104
      %p107 = scmp.ne.s32.totalorder %s90, %s106
      %p108 = scmp.eq.s32.totalorder %s16, 0
      %p109 = por %p107, %p108
      %s110 = ssub.s32 %s17, %s29
      %p111 = scmp.eq.s32.totalorder %s110, 0
      %s113 = sadd.s32 %s112, 1
      %s114 = scalar_select %p111, %s112, %s113
      %p117 = pneg %p111
      %p118 = scmp.eq.s32.totalorder %s10, 1
      %p119 = por %p117, %p118
      %p120 = scmp.ne.s32.totalorder %s112, %s115
      %p121 = scmp.eq.s32.totalorder %s10, 0
      %p122 = por %p120, %p121
      %p123 = scmp.ne.s32.totalorder %s112, %s115
      %p124 = scmp.eq.s32.totalorder %s15, 1
      %p125 = por %p123, %p124
      %p126 = scmp.ne.s32.totalorder %s115, %s116
      %p127 = scmp.eq.s32.totalorder %s15, 0
      %p128 = por %p126, %p127
      %p129 = scmp.ne.s32.totalorder %s115, %s116
      %p130 = scmp.eq.s32.totalorder %s16, 1
      %p131 = por %p129, %p130
      %p133 = scmp.ne.s32.totalorder %s116, %s132
      %p134 = scmp.eq.s32.totalorder %s16, 0
      %p135 = por %p133, %p134
      %p136 = scmp.le.s32.totalorder 1, %s10
      %p137 = scmp.lt.s32.totalorder %s10, 3
      %p138 = pnand %p136, %p137
      %p139 = pneg %p138
      // Predicated region
      $region9: #{netd_forward.5} parent=5 // pred_check
        _
      $region10: #{netd_forward.5} parent=5 // pred_check_branch
        %141 = sbr.rel (%p138) target = $region12
      $region11: #{netd_forward.5} parent=5 // pred_region
        %s142 = ssub.s32 %s10, 1
      $region12: #{netd_forward.5} parent=5 // pred_fallthru
        _
      %p143 = scmp.lt.s32.totalorder %s10, 2
      // Predicated region
      $region13: #{netd_forward.5} parent=5 // pred_check
        %p144 = pneg %p143
      $region14: #{netd_forward.5} parent=5 // pred_check_branch
        %146 = sbr.rel (%p144) target = $region16
      $region15: #{netd_forward.5} parent=5 // pred_region
        // Predicated region
        $region17: #{netd_forward.5} parent=15 // pred_check
          %p147 = pneg %p44
        $region18: #{netd_forward.5} parent=15 // pred_check_branch
          %149 = sbr.rel (%p147) target = $region20
        $region19: #{netd_forward.5} parent=15 // pred_region
          %s150 = sand.u32 %s34, 1
          %s151 = sand.u32 %s34, 1
          %s152 = smul.addr %s151, 128
          %s153 = scalar_lea.vmem [#allocation3], %s152
          %s154 = smul.u32 4, %s17
          %s155 = smul.u32 8, %s18
          %s156 = smul.addr %s154, 16
          %s157 = sadd.s32 %s155, %s156
          %s158 = smul.addr %s157, 4
          %s159 = scalar_lea.vmem %s0, %s158
          // Predicated region
          $region21: #{netd_forward.5} parent=19 // pred_check
            _
          $region22: #{netd_forward.5} parent=19 // pred_check_branch
            %161 = sbr.rel (0) target = $region24
          $region23: #{netd_forward.5} parent=19 // pred_region
            // Predicated region
            $region25: #{netd_forward.5} parent=23 // pred_check
              _
            $region26: #{netd_forward.5} parent=23 // pred_check_branch
              %163 = sbr.rel (0) target = $region28
            $region27: #{netd_forward.5} parent=23 // pred_region
              loop: start=0, step=1, limit=1
              $region29: #{netd_forward.5} parent=27 // loop_pre_header
                _
              $region30: #{netd_forward.5} parent=27 // loop_header
                %s165 = sphi 0, %s169
                %p166 = scmp.ge.s32.totalorder %s165, 1
                %s170 = sphi %s159, %s159
                %s171 = sphi %s153, %s153
              $region31: #{netd_forward.5} parent=27 // loop_header_branch
                %168 = sbr.rel (%p166) target = $region35
              $region32: #{netd_forward.5} parent=27 // loop_body
                %v172 = vld [vmem:[%s170] sm:$0xff]
                %173 = vst [vmem:[%s171] sm:$0xff] %v172
                %v174 = vld [vmem:[%s170 + $0x8] sm:$0xff]
                %175 = vst [vmem:[%s171 + $0x8] sm:$0xff] %v174
                %v176 = vld [vmem:[%s170 + $0x10] sm:$0xff]
                %177 = vst [vmem:[%s171 + $0x10] sm:$0xff] %v176
                %v178 = vld [vmem:[%s170 + $0x18] sm:$0xff]
                %179 = vst [vmem:[%s171 + $0x18] sm:$0xff] %v178
                %v180 = vld [vmem:[%s170 + $0x40] sm:$0xff]
                %181 = vst [vmem:[%s171 + $0x20] sm:$0xff] %v180
                %v182 = vld [vmem:[%s170 + $0x48] sm:$0xff]
                %183 = vst [vmem:[%s171 + $0x28] sm:$0xff] %v182
                %v184 = vld [vmem:[%s170 + $0x50] sm:$0xff]
                %185 = vst [vmem:[%s171 + $0x30] sm:$0xff] %v184
                %v186 = vld [vmem:[%s170 + $0x58] sm:$0xff]
                %187 = vst [vmem:[%s171 + $0x38] sm:$0xff] %v186
                %v188 = vld [vmem:[%s170 + $0x80] sm:$0xff]
                %189 = vst [vmem:[%s171 + $0x40] sm:$0xff] %v188
                %v190 = vld [vmem:[%s170 + $0x88] sm:$0xff]
                %191 = vst [vmem:[%s171 + $0x48] sm:$0xff] %v190
                %v192 = vld [vmem:[%s170 + $0x90] sm:$0xff]
                %193 = vst [vmem:[%s171 + $0x50] sm:$0xff] %v192
                %v194 = vld [vmem:[%s170 + $0x98] sm:$0xff]
                %195 = vst [vmem:[%s171 + $0x58] sm:$0xff] %v194
                %v196 = vld [vmem:[%s170 + $0xc0] sm:$0xff]
                %197 = vst [vmem:[%s171 + $0x60] sm:$0xff] %v196
                %v198 = vld [vmem:[%s170 + $0xc8] sm:$0xff]
                %199 = vst [vmem:[%s171 + $0x68] sm:$0xff] %v198
                %v200 = vld [vmem:[%s170 + $0xd0] sm:$0xff]
                %201 = vst [vmem:[%s171 + $0x70] sm:$0xff] %v200
                %v202 = vld [vmem:[%s170 + $0xd8] sm:$0xff]
                %203 = vst [vmem:[%s171 + $0x78] sm:$0xff] %v202
              $region33: #{netd_forward.5} parent=27 // loop_footer
                %s169 = sadd.s32 1, %s165
              $region34: #{netd_forward.5} parent=27 // loop_footer_branch
                %164 = sbr.rel target = $region30
              $region35: #{netd_forward.5} parent=27 // loop_exit
                _
            $region28: #{netd_forward.5} parent=23 // pred_fallthru
              _
            // Predicated region
            $region36: #{netd_forward.5} parent=23 // pred_check
              _
            $region37: #{netd_forward.5} parent=23 // pred_check_branch
              %205 = sbr.rel target = $region39
            $region38: #{netd_forward.5} parent=23 // pred_region
              _
            $region39: #{netd_forward.5} parent=23 // pred_fallthru
              _
          $region24: #{netd_forward.5} parent=19 // pred_fallthru
            _
          %206 = vnop
        $region20: #{netd_forward.5} parent=15 // pred_fallthru
          _
        // Predicated region
        $region40: #{netd_forward.5} parent=15 // pred_check
          %p207 = pneg %p70
        $region41: #{netd_forward.5} parent=15 // pred_check_branch
          %209 = sbr.rel (%p207) target = $region43
        $region42: #{netd_forward.5} parent=15 // pred_region
          %s210 = smul.u32 128, %s18
          %p211 = scmp.lt.s32.totalorder %s210, 255
          %s212 = scalar_select %p211, %s210, 255
          %s213 = smul.addr %s212, 4
          %s214 = scalar_lea.vmem %s1, %s213
          %s215 = smul.u32 128, %s18
        $region43: #{netd_forward.5} parent=15 // pred_fallthru
          _
      $region16: #{netd_forward.5} parent=5 // pred_fallthru
        _
      %p216 = scmp.le.s32.totalorder 1, %s10
      %p217 = scmp.lt.s32.totalorder %s10, 3
      %p218 = pnand %p216, %p217
      %p219 = pneg %p218
      // Predicated region
      $region44: #{netd_forward.5} parent=5 // pred_check
        _
      $region45: #{netd_forward.5} parent=5 // pred_check_branch
        %221 = sbr.rel (%p218) target = $region47
      $region46: #{netd_forward.5} parent=5 // pred_region
        %s222 = ssub.s32 %s10, 1
        %s223 = sand.u32 %s37, 1
        %s224 = sand.u32 %s37, 1
        %s225 = smul.addr %s224, 128
        %s226 = scalar_lea.vmem [#allocation3], %s225
        // Predicated region
        $region48: #{netd_forward.5} parent=46 // pred_check
          %p227 = pneg %p50
        $region49: #{netd_forward.5} parent=46 // pred_check_branch
          %229 = sbr.rel (%p227) target = $region51
        $region50: #{netd_forward.5} parent=46 // pred_region
          _
        $region51: #{netd_forward.5} parent=46 // pred_fallthru
          _
        %s230 = sand.u32 %s37, 1
        %s231 = sand.u32 %s37, 1
        %s232 = smul.addr %s231, 128
        %s233 = scalar_lea.vmem [#allocation3], %s232
        %p234 = pneg %p50
        %p235 = pneg %p47
        %s236 = smul.u32 128, %s20
        %p237 = scmp.lt.s32.totalorder %s236, 255
        %s238 = scalar_select %p237, %s236, 255
        %s239 = smul.addr %s238, 4
        %s240 = scalar_lea.vmem %s1, %s239
        %p241 = pneg %p76
        %p242 = pneg %p73
        %p243 = pneg %p102
        %p244 = pneg %p99
        %s245 = smul.u32 4, %s19
        %p246 = scmp.lt.s32.totalorder %s245, 3
        %s247 = scalar_select %p246, %s245, 3
        %s248 = smul.addr %s247, 8
        %s249 = scalar_lea.vmem %s2, %s248
        %p250 = pneg %p128
        %p251 = pneg %p125
        %p252 = scmp.lt.s32.totalorder %s19, 0
        %s253 = scalar_select %p252, %s19, 0
        %s254 = smul.addr %s253, 8
        %s255 = scalar_lea.vmem %s3, %s254
        %s256 = smul.u32 4, %s19
        %s257 = smul.u32 8, %s20
        %s258 = smul.u32 128, %s20
        %p259 = scmp.lt.s32.totalorder %s258, 255
        %s260 = scalar_select %p259, %s258, 255
        %s261 = smul.addr %s260, 4
        %s262 = scalar_lea.vmem %s1, %s261
        %s263 = smul.u32 128, %s20
        %s264 = smul.u32 4, %s19
        %p265 = scmp.lt.s32.totalorder %s264, 3
        %s266 = scalar_select %p265, %s264, 3
        %s267 = smul.addr %s266, 8
        %s268 = scalar_lea.vmem %s2, %s267
        %s269 = smul.u32 4, %s19
        %p270 = scmp.lt.s32.totalorder %s19, 0
        %s271 = scalar_select %p270, %s19, 0
        %s272 = smul.addr %s271, 8
        %s273 = scalar_lea.vmem %s3, %s272
        %p275 = scmp.eq.s32.totalorder %s20, 0
        // Predicated region
        $region52: #{netd_forward.5} parent=46 // pred_check
          %p276 = pneg %p275
        $region53: #{netd_forward.5} parent=46 // pred_check_branch
          %278 = sbr.rel (%p276) target = $region55
        $region54: #{netd_forward.5} parent=46 // pred_region
          %279 = vst [vmem:[#allocation2] sm:$0xff] 0.0
          %280 = vst [vmem:[#allocation2 + $0x8] sm:$0xff] 0.0
          %281 = vst [vmem:[#allocation2 + $0x10] sm:$0xff] 0.0
          %282 = vst [vmem:[#allocation2 + $0x18] sm:$0xff] 0.0
        $region55: #{netd_forward.5} parent=46 // pred_fallthru
          _
        %v283 = vld [vmem:[#allocation2] sm:$0xff]
        %v284 = vld [vmem:[#allocation2 + $0x8] sm:$0xff]
        %v285 = vld [vmem:[#allocation2 + $0x10] sm:$0xff]
        %v286 = vld [vmem:[#allocation2 + $0x18] sm:$0xff]
        %v287 = vld [vmem:[%s226] sm:$0xff]
        %v288 = vld [vmem:[%s226 + $0x8] sm:$0xff]
        %v289 = vld [vmem:[%s226 + $0x10] sm:$0xff]
        %v290 = vld [vmem:[%s226 + $0x18] sm:$0xff]
        %v291 = vld [vmem:[%s226 + $0x20] sm:$0xff]
        %v292 = vld [vmem:[%s226 + $0x28] sm:$0xff]
        %v293 = vld [vmem:[%s226 + $0x30] sm:$0xff]
        %v294 = vld [vmem:[%s226 + $0x38] sm:$0xff]
        %v295 = vld [vmem:[%s226 + $0x40] sm:$0xff]
        %v296 = vld [vmem:[%s226 + $0x48] sm:$0xff]
        %v297 = vld [vmem:[%s226 + $0x50] sm:$0xff]
        %v298 = vld [vmem:[%s226 + $0x58] sm:$0xff]
        %v299 = vld [vmem:[%s226 + $0x60] sm:$0xff]
        %v300 = vld [vmem:[%s226 + $0x68] sm:$0xff]
        %v301 = vld [vmem:[%s226 + $0x70] sm:$0xff]
        %v302 = vld [vmem:[%s226 + $0x78] sm:$0xff]
        %v303 = vld [vmem:[%s262] sm:$0xf]
        %v304 = vld [vmem:[%s262 + $0x4] sm:$0xf]
        %v305 = vld [vmem:[%s262 + $0x8] sm:$0xf]
        %v306 = vld [vmem:[%s262 + $0xc] sm:$0xf]
        %v307 = vld [vmem:[%s262 + $0x10] sm:$0xf]
        %v308 = vld [vmem:[%s262 + $0x14] sm:$0xf]
        %v309 = vld [vmem:[%s262 + $0x18] sm:$0xf]
        %v310 = vld [vmem:[%s262 + $0x1c] sm:$0xf]
        %v311 = vld [vmem:[%s262 + $0x20] sm:$0xf]
        %v312 = vld [vmem:[%s262 + $0x24] sm:$0xf]
        %v313 = vld [vmem:[%s262 + $0x28] sm:$0xf]
        %v314 = vld [vmem:[%s262 + $0x2c] sm:$0xf]
        %v315 = vld [vmem:[%s262 + $0x30] sm:$0xf]
        %v316 = vld [vmem:[%s262 + $0x34] sm:$0xf]
        %v317 = vld [vmem:[%s262 + $0x38] sm:$0xf]
        %v318 = vld [vmem:[%s262 + $0x3c] sm:$0xf]
        %v319 = vld [vmem:[%s262 + $0x40] sm:$0xf]
        %v320 = vld [vmem:[%s262 + $0x44] sm:$0xf]
        %v321 = vld [vmem:[%s262 + $0x48] sm:$0xf]
        %v322 = vld [vmem:[%s262 + $0x4c] sm:$0xf]
        %v323 = vld [vmem:[%s262 + $0x50] sm:$0xf]
        %v324 = vld [vmem:[%s262 + $0x54] sm:$0xf]
        %v325 = vld [vmem:[%s262 + $0x58] sm:$0xf]
        %v326 = vld [vmem:[%s262 + $0x5c] sm:$0xf]
        %v327 = vld [vmem:[%s262 + $0x60] sm:$0xf]
        %v328 = vld [vmem:[%s262 + $0x64] sm:$0xf]
        %v329 = vld [vmem:[%s262 + $0x68] sm:$0xf]
        %v330 = vld [vmem:[%s262 + $0x6c] sm:$0xf]
        %v331 = vld [vmem:[%s262 + $0x70] sm:$0xf]
        %v332 = vld [vmem:[%s262 + $0x74] sm:$0xf]
        %v333 = vld [vmem:[%s262 + $0x78] sm:$0xf]
        %v334 = vld [vmem:[%s262 + $0x7c] sm:$0xf]
        %v335 = vld [vmem:[%s262 + $0x80] sm:$0xf]
        %v336 = vld [vmem:[%s262 + $0x84] sm:$0xf]
        %v337 = vld [vmem:[%s262 + $0x88] sm:$0xf]
        %v338 = vld [vmem:[%s262 + $0x8c] sm:$0xf]
        %v339 = vld [vmem:[%s262 + $0x90] sm:$0xf]
        %v340 = vld [vmem:[%s262 + $0x94] sm:$0xf]
        %v341 = vld [vmem:[%s262 + $0x98] sm:$0xf]
        %v342 = vld [vmem:[%s262 + $0x9c] sm:$0xf]
        %v343 = vld [vmem:[%s262 + $0xa0] sm:$0xf]
        %v344 = vld [vmem:[%s262 + $0xa4] sm:$0xf]
        %v345 = vld [vmem:[%s262 + $0xa8] sm:$0xf]
        %v346 = vld [vmem:[%s262 + $0xac] sm:$0xf]
        %v347 = vld [vmem:[%s262 + $0xb0] sm:$0xf]
        %v348 = vld [vmem:[%s262 + $0xb4] sm:$0xf]
        %v349 = vld [vmem:[%s262 + $0xb8] sm:$0xf]
        %v350 = vld [vmem:[%s262 + $0xbc] sm:$0xf]
        %v351 = vld [vmem:[%s262 + $0xc0] sm:$0xf]
        %v352 = vld [vmem:[%s262 + $0xc4] sm:$0xf]
        %v353 = vld [vmem:[%s262 + $0xc8] sm:$0xf]
        %v354 = vld [vmem:[%s262 + $0xcc] sm:$0xf]
        %v355 = vld [vmem:[%s262 + $0xd0] sm:$0xf]
        %v356 = vld [vmem:[%s262 + $0xd4] sm:$0xf]
        %v357 = vld [vmem:[%s262 + $0xd8] sm:$0xf]
        %v358 = vld [vmem:[%s262 + $0xdc] sm:$0xf]
        %v359 = vld [vmem:[%s262 + $0xe0] sm:$0xf]
        %v360 = vld [vmem:[%s262 + $0xe4] sm:$0xf]
        %v361 = vld [vmem:[%s262 + $0xe8] sm:$0xf]
        %v362 = vld [vmem:[%s262 + $0xec] sm:$0xf]
        %v363 = vld [vmem:[%s262 + $0xf0] sm:$0xf]
        %v364 = vld [vmem:[%s262 + $0xf4] sm:$0xf]
        %v365 = vld [vmem:[%s262 + $0xf8] sm:$0xf]
        %v366 = vld [vmem:[%s262 + $0xfc] sm:$0xf]
        %v367 = vld [vmem:[%s262 + $0x100] sm:$0xf]
        %v368 = vld [vmem:[%s262 + $0x104] sm:$0xf]
        %v369 = vld [vmem:[%s262 + $0x108] sm:$0xf]
        %v370 = vld [vmem:[%s262 + $0x10c] sm:$0xf]
        %v371 = vld [vmem:[%s262 + $0x110] sm:$0xf]
        %v372 = vld [vmem:[%s262 + $0x114] sm:$0xf]
        %v373 = vld [vmem:[%s262 + $0x118] sm:$0xf]
        %v374 = vld [vmem:[%s262 + $0x11c] sm:$0xf]
        %v375 = vld [vmem:[%s262 + $0x120] sm:$0xf]
        %v376 = vld [vmem:[%s262 + $0x124] sm:$0xf]
        %v377 = vld [vmem:[%s262 + $0x128] sm:$0xf]
        %v378 = vld [vmem:[%s262 + $0x12c] sm:$0xf]
        %v379 = vld [vmem:[%s262 + $0x130] sm:$0xf]
        %v380 = vld [vmem:[%s262 + $0x134] sm:$0xf]
        %v381 = vld [vmem:[%s262 + $0x138] sm:$0xf]
        %v382 = vld [vmem:[%s262 + $0x13c] sm:$0xf]
        %v383 = vld [vmem:[%s262 + $0x140] sm:$0xf]
        %v384 = vld [vmem:[%s262 + $0x144] sm:$0xf]
        %v385 = vld [vmem:[%s262 + $0x148] sm:$0xf]
        %v386 = vld [vmem:[%s262 + $0x14c] sm:$0xf]
        %v387 = vld [vmem:[%s262 + $0x150] sm:$0xf]
        %v388 = vld [vmem:[%s262 + $0x154] sm:$0xf]
        %v389 = vld [vmem:[%s262 + $0x158] sm:$0xf]
        %v390 = vld [vmem:[%s262 + $0x15c] sm:$0xf]
        %v391 = vld [vmem:[%s262 + $0x160] sm:$0xf]
        %v392 = vld [vmem:[%s262 + $0x164] sm:$0xf]
        %v393 = vld [vmem:[%s262 + $0x168] sm:$0xf]
        %v394 = vld [vmem:[%s262 + $0x16c] sm:$0xf]
        %v395 = vld [vmem:[%s262 + $0x170] sm:$0xf]
        %v396 = vld [vmem:[%s262 + $0x174] sm:$0xf]
        %v397 = vld [vmem:[%s262 + $0x178] sm:$0xf]
        %v398 = vld [vmem:[%s262 + $0x17c] sm:$0xf]
        %v399 = vld [vmem:[%s262 + $0x180] sm:$0xf]
        %v400 = vld [vmem:[%s262 + $0x184] sm:$0xf]
        %v401 = vld [vmem:[%s262 + $0x188] sm:$0xf]
        %v402 = vld [vmem:[%s262 + $0x18c] sm:$0xf]
        %v403 = vld [vmem:[%s262 + $0x190] sm:$0xf]
        %v404 = vld [vmem:[%s262 + $0x194] sm:$0xf]
        %v405 = vld [vmem:[%s262 + $0x198] sm:$0xf]
        %v406 = vld [vmem:[%s262 + $0x19c] sm:$0xf]
        %v407 = vld [vmem:[%s262 + $0x1a0] sm:$0xf]
        %v408 = vld [vmem:[%s262 + $0x1a4] sm:$0xf]
        %v409 = vld [vmem:[%s262 + $0x1a8] sm:$0xf]
        %v410 = vld [vmem:[%s262 + $0x1ac] sm:$0xf]
        %v411 = vld [vmem:[%s262 + $0x1b0] sm:$0xf]
        %v412 = vld [vmem:[%s262 + $0x1b4] sm:$0xf]
        %v413 = vld [vmem:[%s262 + $0x1b8] sm:$0xf]
        %v414 = vld [vmem:[%s262 + $0x1bc] sm:$0xf]
        %v415 = vld [vmem:[%s262 + $0x1c0] sm:$0xf]
        %v416 = vld [vmem:[%s262 + $0x1c4] sm:$0xf]
        %v417 = vld [vmem:[%s262 + $0x1c8] sm:$0xf]
        %v418 = vld [vmem:[%s262 + $0x1cc] sm:$0xf]
        %v419 = vld [vmem:[%s262 + $0x1d0] sm:$0xf]
        %v420 = vld [vmem:[%s262 + $0x1d4] sm:$0xf]
        %v421 = vld [vmem:[%s262 + $0x1d8] sm:$0xf]
        %v422 = vld [vmem:[%s262 + $0x1dc] sm:$0xf]
        %v423 = vld [vmem:[%s262 + $0x1e0] sm:$0xf]
        %v424 = vld [vmem:[%s262 + $0x1e4] sm:$0xf]
        %v425 = vld [vmem:[%s262 + $0x1e8] sm:$0xf]
        %v426 = vld [vmem:[%s262 + $0x1ec] sm:$0xf]
        %v427 = vld [vmem:[%s262 + $0x1f0] sm:$0xf]
        %v428 = vld [vmem:[%s262 + $0x1f4] sm:$0xf]
        %v429 = vld [vmem:[%s262 + $0x1f8] sm:$0xf]
        %v430 = vld [vmem:[%s262 + $0x1fc] sm:$0xf]
        %v447 = vunpack.c.l.b16 %v287
        %v448 = vunpack.c.h.b16 %v287
        %v449 = vunpack.c.l.b16 %v288
        %v450 = vunpack.c.h.b16 %v288
        %v451 = vunpack.c.l.b16 %v289
        %v452 = vunpack.c.h.b16 %v289
        %v453 = vunpack.c.l.b16 %v290
        %v454 = vunpack.c.h.b16 %v290
        %v455 = vunpack.c.l.b16 %v291
        %v456 = vunpack.c.h.b16 %v291
        %v457 = vunpack.c.l.b16 %v292
        %v458 = vunpack.c.h.b16 %v292
        %v459 = vunpack.c.l.b16 %v293
        %v460 = vunpack.c.h.b16 %v293
        %v461 = vunpack.c.l.b16 %v294
        %v462 = vunpack.c.h.b16 %v294
        %v463 = vunpack.c.l.b16 %v295
        %v464 = vunpack.c.h.b16 %v295
        %v465 = vunpack.c.l.b16 %v296
        %v466 = vunpack.c.h.b16 %v296
        %v467 = vunpack.c.l.b16 %v297
        %v468 = vunpack.c.h.b16 %v297
        %v469 = vunpack.c.l.b16 %v298
        %v470 = vunpack.c.h.b16 %v298
        %v471 = vunpack.c.l.b16 %v299
        %v472 = vunpack.c.h.b16 %v299
        %v473 = vunpack.c.l.b16 %v300
        %v474 = vunpack.c.h.b16 %v300
        %v475 = vunpack.c.l.b16 %v301
        %v476 = vunpack.c.h.b16 %v301
        %v477 = vunpack.c.l.b16 %v302
        %v478 = vunpack.c.h.b16 %v302
        %v479 = vpack.c.b16 %v455, %v447
        %v480 = vpack.c.b16 %v456, %v448
        %v481 = vpack.c.b16 %v457, %v449
        %v482 = vpack.c.b16 %v458, %v450
        %v483 = vpack.c.b16 %v459, %v451
        %v484 = vpack.c.b16 %v460, %v452
        %v485 = vpack.c.b16 %v461, %v453
        %v486 = vpack.c.b16 %v462, %v454
        %v487 = vpack.c.b16 %v471, %v463
        %v488 = vpack.c.b16 %v472, %v464
        %v489 = vpack.c.b16 %v473, %v465
        %v490 = vpack.c.b16 %v474, %v466
        %v491 = vpack.c.b16 %v475, %v467
        %v492 = vpack.c.b16 %v476, %v468
        %v493 = vpack.c.b16 %v477, %v469
        %v494 = vpack.c.b16 %v478, %v470
        %v639 = vunpack.c.l.b16 %v303
        %v640 = vunpack.c.l.b16 %v304
        %v641 = vunpack.c.l.b16 %v305
        %v642 = vunpack.c.l.b16 %v306
        %v643 = vunpack.c.l.b16 %v307
        %v644 = vunpack.c.l.b16 %v308
        %v645 = vunpack.c.l.b16 %v309
        %v646 = vunpack.c.l.b16 %v310
        %v647 = vunpack.c.l.b16 %v311
        %v648 = vunpack.c.l.b16 %v312
        %v649 = vunpack.c.l.b16 %v313
        %v650 = vunpack.c.l.b16 %v314
        %v651 = vunpack.c.l.b16 %v315
        %v652 = vunpack.c.l.b16 %v316
        %v653 = vunpack.c.l.b16 %v317
        %v654 = vunpack.c.l.b16 %v318
        %v655 = vunpack.c.l.b16 %v319
        %v656 = vunpack.c.l.b16 %v320
        %v657 = vunpack.c.l.b16 %v321
        %v658 = vunpack.c.l.b16 %v322
        %v659 = vunpack.c.l.b16 %v323
        %v660 = vunpack.c.l.b16 %v324
        %v661 = vunpack.c.l.b16 %v325
        %v662 = vunpack.c.l.b16 %v326
        %v663 = vunpack.c.l.b16 %v327
        %v664 = vunpack.c.l.b16 %v328
        %v665 = vunpack.c.l.b16 %v329
        %v666 = vunpack.c.l.b16 %v330
        %v667 = vunpack.c.l.b16 %v331
        %v668 = vunpack.c.l.b16 %v332
        %v669 = vunpack.c.l.b16 %v333
        %v670 = vunpack.c.l.b16 %v334
        %v671 = vunpack.c.l.b16 %v335
        %v672 = vunpack.c.l.b16 %v336
        %v673 = vunpack.c.l.b16 %v337
        %v674 = vunpack.c.l.b16 %v338
        %v675 = vunpack.c.l.b16 %v339
        %v676 = vunpack.c.l.b16 %v340
        %v677 = vunpack.c.l.b16 %v341
        %v678 = vunpack.c.l.b16 %v342
        %v679 = vunpack.c.l.b16 %v343
        %v680 = vunpack.c.l.b16 %v344
        %v681 = vunpack.c.l.b16 %v345
        %v682 = vunpack.c.l.b16 %v346
        %v683 = vunpack.c.l.b16 %v347
        %v684 = vunpack.c.l.b16 %v348
        %v685 = vunpack.c.l.b16 %v349
        %v686 = vunpack.c.l.b16 %v350
        %v687 = vunpack.c.l.b16 %v351
        %v688 = vunpack.c.l.b16 %v352
        %v689 = vunpack.c.l.b16 %v353
        %v690 = vunpack.c.l.b16 %v354
        %v691 = vunpack.c.l.b16 %v355
        %v692 = vunpack.c.l.b16 %v356
        %v693 = vunpack.c.l.b16 %v357
        %v694 = vunpack.c.l.b16 %v358
        %v695 = vunpack.c.l.b16 %v359
        %v696 = vunpack.c.l.b16 %v360
        %v697 = vunpack.c.l.b16 %v361
        %v698 = vunpack.c.l.b16 %v362
        %v699 = vunpack.c.l.b16 %v363
        %v700 = vunpack.c.l.b16 %v364
        %v701 = vunpack.c.l.b16 %v365
        %v702 = vunpack.c.l.b16 %v366
        %v703 = vunpack.c.l.b16 %v367
        %v704 = vunpack.c.l.b16 %v368
        %v705 = vunpack.c.l.b16 %v369
        %v706 = vunpack.c.l.b16 %v370
        %v707 = vunpack.c.l.b16 %v371
        %v708 = vunpack.c.l.b16 %v372
        %v709 = vunpack.c.l.b16 %v373
        %v710 = vunpack.c.l.b16 %v374
        %v711 = vunpack.c.l.b16 %v375
        %v712 = vunpack.c.l.b16 %v376
        %v713 = vunpack.c.l.b16 %v377
        %v714 = vunpack.c.l.b16 %v378
        %v715 = vunpack.c.l.b16 %v379
        %v716 = vunpack.c.l.b16 %v380
        %v717 = vunpack.c.l.b16 %v381
        %v718 = vunpack.c.l.b16 %v382
        %v719 = vunpack.c.l.b16 %v383
        %v720 = vunpack.c.l.b16 %v384
        %v721 = vunpack.c.l.b16 %v385
        %v722 = vunpack.c.l.b16 %v386
        %v723 = vunpack.c.l.b16 %v387
        %v724 = vunpack.c.l.b16 %v388
        %v725 = vunpack.c.l.b16 %v389
        %v726 = vunpack.c.l.b16 %v390
        %v727 = vunpack.c.l.b16 %v391
        %v728 = vunpack.c.l.b16 %v392
        %v729 = vunpack.c.l.b16 %v393
        %v730 = vunpack.c.l.b16 %v394
        %v731 = vunpack.c.l.b16 %v395
        %v732 = vunpack.c.l.b16 %v396
        %v733 = vunpack.c.l.b16 %v397
        %v734 = vunpack.c.l.b16 %v398
        %v735 = vunpack.c.l.b16 %v399
        %v736 = vunpack.c.l.b16 %v400
        %v737 = vunpack.c.l.b16 %v401
        %v738 = vunpack.c.l.b16 %v402
        %v739 = vunpack.c.l.b16 %v403
        %v740 = vunpack.c.l.b16 %v404
        %v741 = vunpack.c.l.b16 %v405
        %v742 = vunpack.c.l.b16 %v406
        %v743 = vunpack.c.l.b16 %v407
        %v744 = vunpack.c.l.b16 %v408
        %v745 = vunpack.c.l.b16 %v409
        %v746 = vunpack.c.l.b16 %v410
        %v747 = vunpack.c.l.b16 %v411
        %v748 = vunpack.c.l.b16 %v412
        %v749 = vunpack.c.l.b16 %v413
        %v750 = vunpack.c.l.b16 %v414
        %v751 = vunpack.c.l.b16 %v415
        %v752 = vunpack.c.l.b16 %v416
        %v753 = vunpack.c.l.b16 %v417
        %v754 = vunpack.c.l.b16 %v418
        %v755 = vunpack.c.l.b16 %v419
        %v756 = vunpack.c.l.b16 %v420
        %v757 = vunpack.c.l.b16 %v421
        %v758 = vunpack.c.l.b16 %v422
        %v759 = vunpack.c.l.b16 %v423
        %v760 = vunpack.c.l.b16 %v424
        %v761 = vunpack.c.l.b16 %v425
        %v762 = vunpack.c.l.b16 %v426
        %v763 = vunpack.c.l.b16 %v427
        %v764 = vunpack.c.l.b16 %v428
        %v765 = vunpack.c.l.b16 %v429
        %v766 = vunpack.c.l.b16 %v430
        %v767 = vpack.c.b16 %v640, %v639
        %v768 = vpack.c.b16 %v642, %v641
        %v769 = vpack.c.b16 %v644, %v643
        %v770 = vpack.c.b16 %v646, %v645
        %v771 = vpack.c.b16 %v648, %v647
        %v772 = vpack.c.b16 %v650, %v649
        %v773 = vpack.c.b16 %v652, %v651
        %v774 = vpack.c.b16 %v654, %v653
        %v775 = vpack.c.b16 %v656, %v655
        %v776 = vpack.c.b16 %v658, %v657
        %v777 = vpack.c.b16 %v660, %v659
        %v778 = vpack.c.b16 %v662, %v661
        %v779 = vpack.c.b16 %v664, %v663
        %v780 = vpack.c.b16 %v666, %v665
        %v781 = vpack.c.b16 %v668, %v667
        %v782 = vpack.c.b16 %v670, %v669
        %v783 = vpack.c.b16 %v672, %v671
        %v784 = vpack.c.b16 %v674, %v673
        %v785 = vpack.c.b16 %v676, %v675
        %v786 = vpack.c.b16 %v678, %v677
        %v787 = vpack.c.b16 %v680, %v679
        %v788 = vpack.c.b16 %v682, %v681
        %v789 = vpack.c.b16 %v684, %v683
        %v790 = vpack.c.b16 %v686, %v685
        %v791 = vpack.c.b16 %v688, %v687
        %v792 = vpack.c.b16 %v690, %v689
        %v793 = vpack.c.b16 %v692, %v691
        %v794 = vpack.c.b16 %v694, %v693
        %v795 = vpack.c.b16 %v696, %v695
        %v796 = vpack.c.b16 %v698, %v697
        %v797 = vpack.c.b16 %v700, %v699
        %v798 = vpack.c.b16 %v702, %v701
        %v799 = vpack.c.b16 %v704, %v703
        %v800 = vpack.c.b16 %v706, %v705
        %v801 = vpack.c.b16 %v708, %v707
        %v802 = vpack.c.b16 %v710, %v709
        %v803 = vpack.c.b16 %v712, %v711
        %v804 = vpack.c.b16 %v714, %v713
        %v805 = vpack.c.b16 %v716, %v715
        %v806 = vpack.c.b16 %v718, %v717
        %v807 = vpack.c.b16 %v720, %v719
        %v808 = vpack.c.b16 %v722, %v721
        %v809 = vpack.c.b16 %v724, %v723
        %v810 = vpack.c.b16 %v726, %v725
        %v811 = vpack.c.b16 %v728, %v727
        %v812 = vpack.c.b16 %v730, %v729
        %v813 = vpack.c.b16 %v732, %v731
        %v814 = vpack.c.b16 %v734, %v733
        %v815 = vpack.c.b16 %v736, %v735
        %v816 = vpack.c.b16 %v738, %v737
        %v817 = vpack.c.b16 %v740, %v739
        %v818 = vpack.c.b16 %v742, %v741
        %v819 = vpack.c.b16 %v744, %v743
        %v820 = vpack.c.b16 %v746, %v745
        %v821 = vpack.c.b16 %v748, %v747
        %v822 = vpack.c.b16 %v750, %v749
        %v823 = vpack.c.b16 %v752, %v751
        %v824 = vpack.c.b16 %v754, %v753
        %v825 = vpack.c.b16 %v756, %v755
        %v826 = vpack.c.b16 %v758, %v757
        %v827 = vpack.c.b16 %v760, %v759
        %v828 = vpack.c.b16 %v762, %v761
        %v829 = vpack.c.b16 %v764, %v763
        %v830 = vpack.c.b16 %v766, %v765
        %895 = vmatprep.subr.bf16.mxu0 0
        %896 = vmatpush1.bf16.msra.mxu0 %v767
        %897 = vmatprep.subr.bf16.mxu0 0
        %898 = vmatpush1.bf16.msra.mxu0 %v768
        %899 = vmatprep.subr.bf16.mxu0 0
        %900 = vmatpush1.bf16.msra.mxu0 %v769
        %901 = vmatprep.subr.bf16.mxu0 0
        %902 = vmatpush1.bf16.msra.mxu0 %v770
        %903 = vmatprep.subr.bf16.mxu0 0
        %904 = vmatpush1.bf16.msra.mxu0 %v771
        %905 = vmatprep.subr.bf16.mxu0 0
        %906 = vmatpush1.bf16.msra.mxu0 %v772
        %907 = vmatprep.subr.bf16.mxu0 0
        %908 = vmatpush1.bf16.msra.mxu0 %v773
        %909 = vmatprep.subr.bf16.mxu0 0
        %910 = vmatpush1.bf16.msra.mxu0 %v774
        %911 = vmatprep.subr.bf16.mxu0 0
        %912 = vmatpush1.bf16.msra.mxu0 %v775
        %913 = vmatprep.subr.bf16.mxu0 0
        %914 = vmatpush1.bf16.msra.mxu0 %v776
        %915 = vmatprep.subr.bf16.mxu0 0
        %916 = vmatpush1.bf16.msra.mxu0 %v777
        %917 = vmatprep.subr.bf16.mxu0 0
        %918 = vmatpush1.bf16.msra.mxu0 %v778
        %919 = vmatprep.subr.bf16.mxu0 0
        %920 = vmatpush1.bf16.msra.mxu0 %v779
        %921 = vmatprep.subr.bf16.mxu0 0
        %922 = vmatpush1.bf16.msra.mxu0 %v780
        %923 = vmatprep.subr.bf16.mxu0 0
        %924 = vmatpush1.bf16.msra.mxu0 %v781
        %925 = vmatprep.subr.bf16.mxu0 0
        %926 = vmatpush1.bf16.msra.mxu0 %v782
        %927 = vmatprep.mubr.bf16.mxu0 %v480
        %928 = vmatmul.mubr.bf16.gmra.mrb[0].mxu0 %v479
        %v929 = vpop.f32.mrb[0].mxu0
        %v930 = vadd.f32 0.0, %v929
        %v931 = vpop.f32.mrb[0].mxu0
        %v932 = vpop.f32.mrb[0].mxu0
        %v933 = vadd.f32 0.0, %v932
        %v934 = vpop.f32.mrb[0].mxu0
        %935 = vmatprep.mubr.bf16.mxu0 %v488
        %936 = vmatmul.mubr.bf16.gmra.mrb[0].mxu0 %v487
        %v937 = vpop.f32.mrb[0].mxu0
        %v938 = vadd.f32 0.0, %v937
        %v939 = vpop.f32.mrb[0].mxu0
        %v940 = vpop.f32.mrb[0].mxu0
        %v941 = vadd.f32 0.0, %v940
        %v942 = vpop.f32.mrb[0].mxu0
        %943 = vdwg.mxu0
        %944 = vmatprep.subr.bf16.mxu0 0
        %945 = vmatpush1.bf16.msra.mxu0 %v783
        %946 = vmatprep.subr.bf16.mxu0 0
        %947 = vmatpush1.bf16.msra.mxu0 %v784
        %948 = vmatprep.subr.bf16.mxu0 0
        %949 = vmatpush1.bf16.msra.mxu0 %v785
        %950 = vmatprep.subr.bf16.mxu0 0
        %951 = vmatpush1.bf16.msra.mxu0 %v786
        %952 = vmatprep.subr.bf16.mxu0 0
        %953 = vmatpush1.bf16.msra.mxu0 %v787
        %954 = vmatprep.subr.bf16.mxu0 0
        %955 = vmatpush1.bf16.msra.mxu0 %v788
        %956 = vmatprep.subr.bf16.mxu0 0
        %957 = vmatpush1.bf16.msra.mxu0 %v789
        %958 = vmatprep.subr.bf16.mxu0 0
        %959 = vmatpush1.bf16.msra.mxu0 %v790
        %960 = vmatprep.subr.bf16.mxu0 0
        %961 = vmatpush1.bf16.msra.mxu0 %v791
        %962 = vmatprep.subr.bf16.mxu0 0
        %963 = vmatpush1.bf16.msra.mxu0 %v792
        %964 = vmatprep.subr.bf16.mxu0 0
        %965 = vmatpush1.bf16.msra.mxu0 %v793
        %966 = vmatprep.subr.bf16.mxu0 0
        %967 = vmatpush1.bf16.msra.mxu0 %v794
        %968 = vmatprep.subr.bf16.mxu0 0
        %969 = vmatpush1.bf16.msra.mxu0 %v795
        %970 = vmatprep.subr.bf16.mxu0 0
        %971 = vmatpush1.bf16.msra.mxu0 %v796
        %972 = vmatprep.subr.bf16.mxu0 0
        %973 = vmatpush1.bf16.msra.mxu0 %v797
        %974 = vmatprep.subr.bf16.mxu0 0
        %975 = vmatpush1.bf16.msra.mxu0 %v798
        %976 = vmatprep.mubr.bf16.mxu0 %v482
        %977 = vmatmul.mubr.bf16.gmra.mrb[0].mxu0 %v481
        %v978 = vpop.f32.mrb[0].mxu0
        %v979 = vadd.f32 %v930, %v978
        %v980 = vpop.f32.mrb[0].mxu0
        %v981 = vpop.f32.mrb[0].mxu0
        %v982 = vadd.f32 %v933, %v981
        %v983 = vpop.f32.mrb[0].mxu0
        %984 = vmatprep.mubr.bf16.mxu0 %v490
        %985 = vmatmul.mubr.bf16.gmra.mrb[0].mxu0 %v489
        %v986 = vpop.f32.mrb[0].mxu0
        %v987 = vadd.f32 %v938, %v986
        %v988 = vpop.f32.mrb[0].mxu0
        %v989 = vpop.f32.mrb[0].mxu0
        %v990 = vadd.f32 %v941, %v989
        %v991 = vpop.f32.mrb[0].mxu0
        %992 = vdwg.mxu0
        %993 = vmatprep.subr.bf16.mxu0 0
        %994 = vmatpush1.bf16.msra.mxu0 %v799
        %995 = vmatprep.subr.bf16.mxu0 0
        %996 = vmatpush1.bf16.msra.mxu0 %v800
        %997 = vmatprep.subr.bf16.mxu0 0
        %998 = vmatpush1.bf16.msra.mxu0 %v801
        %999 = vmatprep.subr.bf16.mxu0 0
        %1000 = vmatpush1.bf16.msra.mxu0 %v802
        %1001 = vmatprep.subr.bf16.mxu0 0
        %1002 = vmatpush1.bf16.msra.mxu0 %v803
        %1003 = vmatprep.subr.bf16.mxu0 0
        %1004 = vmatpush1.bf16.msra.mxu0 %v804
        %1005 = vmatprep.subr.bf16.mxu0 0
        %1006 = vmatpush1.bf16.msra.mxu0 %v805
        %1007 = vmatprep.subr.bf16.mxu0 0
        %1008 = vmatpush1.bf16.msra.mxu0 %v806
        %1009 = vmatprep.subr.bf16.mxu0 0
        %1010 = vmatpush1.bf16.msra.mxu0 %v807
        %1011 = vmatprep.subr.bf16.mxu0 0
        %1012 = vmatpush1.bf16.msra.mxu0 %v808
        %1013 = vmatprep.subr.bf16.mxu0 0
        %1014 = vmatpush1.bf16.msra.mxu0 %v809
        %1015 = vmatprep.subr.bf16.mxu0 0
        %1016 = vmatpush1.bf16.msra.mxu0 %v810
        %1017 = vmatprep.subr.bf16.mxu0 0
        %1018 = vmatpush1.bf16.msra.mxu0 %v811
        %1019 = vmatprep.subr.bf16.mxu0 0
        %1020 = vmatpush1.bf16.msra.mxu0 %v812
        %1021 = vmatprep.subr.bf16.mxu0 0
        %1022 = vmatpush1.bf16.msra.mxu0 %v813
        %1023 = vmatprep.subr.bf16.mxu0 0
        %1024 = vmatpush1.bf16.msra.mxu0 %v814
        %1025 = vmatprep.mubr.bf16.mxu0 %v484
        %1026 = vmatmul.mubr.bf16.gmra.mrb[0].mxu0 %v483
        %v1027 = vpop.f32.mrb[0].mxu0
        %v1028 = vadd.f32 %v979, %v1027
        %v1029 = vpop.f32.mrb[0].mxu0
        %v1030 = vpop.f32.mrb[0].mxu0
        %v1031 = vadd.f32 %v982, %v1030
        %v1032 = vpop.f32.mrb[0].mxu0
        %1033 = vmatprep.mubr.bf16.mxu0 %v492
        %1034 = vmatmul.mubr.bf16.gmra.mrb[0].mxu0 %v491
        %v1035 = vpop.f32.mrb[0].mxu0
        %v1036 = vadd.f32 %v987, %v1035
        %v1037 = vpop.f32.mrb[0].mxu0
        %v1038 = vpop.f32.mrb[0].mxu0
        %v1039 = vadd.f32 %v990, %v1038
        %v1040 = vpop.f32.mrb[0].mxu0
        %1041 = vdwg.mxu0
        %1042 = vmatprep.subr.bf16.mxu0 0
        %1043 = vmatpush1.bf16.msra.mxu0 %v815
        %1044 = vmatprep.subr.bf16.mxu0 0
        %1045 = vmatpush1.bf16.msra.mxu0 %v816
        %1046 = vmatprep.subr.bf16.mxu0 0
        %1047 = vmatpush1.bf16.msra.mxu0 %v817
        %1048 = vmatprep.subr.bf16.mxu0 0
        %1049 = vmatpush1.bf16.msra.mxu0 %v818
        %1050 = vmatprep.subr.bf16.mxu0 0
        %1051 = vmatpush1.bf16.msra.mxu0 %v819
        %1052 = vmatprep.subr.bf16.mxu0 0
        %1053 = vmatpush1.bf16.msra.mxu0 %v820
        %1054 = vmatprep.subr.bf16.mxu0 0
        %1055 = vmatpush1.bf16.msra.mxu0 %v821
        %1056 = vmatprep.subr.bf16.mxu0 0
        %1057 = vmatpush1.bf16.msra.mxu0 %v822
        %1058 = vmatprep.subr.bf16.mxu0 0
        %1059 = vmatpush1.bf16.msra.mxu0 %v823
        %1060 = vmatprep.subr.bf16.mxu0 0
        %1061 = vmatpush1.bf16.msra.mxu0 %v824
        %1062 = vmatprep.subr.bf16.mxu0 0
        %1063 = vmatpush1.bf16.msra.mxu0 %v825
        %1064 = vmatprep.subr.bf16.mxu0 0
        %1065 = vmatpush1.bf16.msra.mxu0 %v826
        %1066 = vmatprep.subr.bf16.mxu0 0
        %1067 = vmatpush1.bf16.msra.mxu0 %v827
        %1068 = vmatprep.subr.bf16.mxu0 0
        %1069 = vmatpush1.bf16.msra.mxu0 %v828
        %1070 = vmatprep.subr.bf16.mxu0 0
        %1071 = vmatpush1.bf16.msra.mxu0 %v829
        %1072 = vmatprep.subr.bf16.mxu0 0
        %1073 = vmatpush1.bf16.msra.mxu0 %v830
        %1074 = vmatprep.mubr.bf16.mxu0 %v486
        %1075 = vmatmul.mubr.bf16.gmra.mrb[0].mxu0 %v485
        %v1076 = vpop.f32.mrb[0].mxu0
        %v1077 = vadd.f32 %v1028, %v1076
        %v1078 = vpop.f32.mrb[0].mxu0
        %v1079 = vpop.f32.mrb[0].mxu0
        %v1080 = vadd.f32 %v1031, %v1079
        %v1081 = vpop.f32.mrb[0].mxu0
        %1082 = vmatprep.mubr.bf16.mxu0 %v494
        %1083 = vmatmul.mubr.bf16.gmra.mrb[0].mxu0 %v493
        %v1084 = vpop.f32.mrb[0].mxu0
        %v1085 = vadd.f32 %v1036, %v1084
        %v1086 = vpop.f32.mrb[0].mxu0
        %v1087 = vpop.f32.mrb[0].mxu0
        %v1088 = vadd.f32 %v1039, %v1087
        %v1089 = vpop.f32.mrb[0].mxu0
        %1090 = vdwg.mxu0
        %v1091 = vadd.f32 %v283, %v1077
        %v1092 = vadd.f32 %v284, %v1080
        %v1093 = vadd.f32 %v285, %v1085
        %v1094 = vadd.f32 %v286, %v1088
        %1095 = vst [vmem:[#allocation2] sm:$0xff] %v1091
        %1096 = vst [vmem:[#allocation2 + $0x8] sm:$0xff] %v1092
        %1097 = vst [vmem:[#allocation2 + $0x10] sm:$0xff] %v1093
        %1098 = vst [vmem:[#allocation2 + $0x18] sm:$0xff] %v1094
        %p1099 = scmp.eq.s32.totalorder %s20, 1
        // Predicated region
        $region56: #{netd_forward.5} parent=46 // pred_check
          %p1100 = pneg %p1099
        $region57: #{netd_forward.5} parent=46 // pred_check_branch
          %1102 = sbr.rel (%p1100) target = $region59
        $region58: #{netd_forward.5} parent=46 // pred_region
          %v1103 = vld [vmem:[#allocation2] sm:$0xff]
          %v1104 = vld [vmem:[#allocation2 + $0x8] sm:$0xff]
          %v1105 = vld [vmem:[#allocation2 + $0x10] sm:$0xff]
          %v1106 = vld [vmem:[#allocation2 + $0x18] sm:$0xff]
          %1107 = vst [vmem:[%s268] sm:$0xff] %v1103
          %1108 = vst [vmem:[%s268 + $0x8] sm:$0xff] %v1104
          %1109 = vst [vmem:[%s268 + $0x10] sm:$0xff] %v1105
          %1110 = vst [vmem:[%s268 + $0x18] sm:$0xff] %v1106
          %1111 = vst [vmem:[%s273] sm:$0xff] 0.0
          %v1112 = vadd.f32 %v1103, %v1104
          %v1113 = vadd.f32 %v1112, %v1105
          %v1114 = vadd.f32 %v1113, %v1106
          %v1115 = vrot.slane %v1114, 4
          %v1116 = vadd.f32 %v1114, %v1115
          %v1117 = vrot.slane %v1116, 2
          %v1118 = vadd.f32 %v1116, %v1117
          %v1119 = vrot.slane %v1118, 1
          %v1120 = vadd.f32 %v1118, %v1119
          %1121 = vst [vmem:[%s273] sm:$0x1] %v1120
          %v1122 = vmul.f32 %v1103, %v1103
          %v1123 = vmul.f32 %v1104, %v1104
          %v1124 = vmul.f32 %v1105, %v1105
          %v1125 = vmul.f32 %v1106, %v1106
          %v1126 = vadd.f32 %v1122, %v1123
          %v1127 = vadd.f32 %v1126, %v1124
          %v1128 = vadd.f32 %v1127, %v1125
          %v1129 = vrot.slane %v1128, 4
          %v1130 = vadd.f32 %v1128, %v1129
          %v1131 = vrot.slane %v1130, 2
          %v1132 = vadd.f32 %v1130, %v1131
          %v1133 = vrot.slane %v1132, 1
          %v1134 = vadd.f32 %v1132, %v1133
          %1135 = vst [vmem:[%s273 + $0x1] sm:$0x1] %v1134
        $region59: #{netd_forward.5} parent=46 // pred_fallthru
          _
        %s1136 = smul.u32 4, %s19
        %p1137 = scmp.lt.s32.totalorder %s1136, 3
        %s1138 = scalar_select %p1137, %s1136, 3
        %s1139 = smul.addr %s1138, 8
        %s1140 = scalar_lea.vmem %s2, %s1139
        %p1141 = scmp.lt.s32.totalorder %s19, 0
        %s1142 = scalar_select %p1141, %s19, 0
        %s1143 = smul.addr %s1142, 8
        %s1144 = scalar_lea.vmem %s3, %s1143
        // Predicated region
        $region60: #{netd_forward.5} parent=46 // pred_check
          %p1145 = pneg %p99
        $region61: #{netd_forward.5} parent=46 // pred_check_branch
          %1147 = sbr.rel (%p1145) target = $region63
        $region62: #{netd_forward.5} parent=46 // pred_region
          %s1148 = smul.u32 4, %s19
        $region63: #{netd_forward.5} parent=46 // pred_fallthru
          _
        // Predicated region
        $region64: #{netd_forward.5} parent=46 // pred_check
          %p1149 = pneg %p125
        $region65: #{netd_forward.5} parent=46 // pred_check_branch
          %1151 = sbr.rel (%p1149) target = $region67
        $region66: #{netd_forward.5} parent=46 // pred_region
          _
        $region67: #{netd_forward.5} parent=46 // pred_fallthru
          _
        // Predicated region
        $region68: #{netd_forward.5} parent=46 // pred_check
          %p1152 = pneg %p99
        $region69: #{netd_forward.5} parent=46 // pred_check_branch
          %1154 = sbr.rel (%p1152) target = $region71
        $region70: #{netd_forward.5} parent=46 // pred_region
          %s1155 = smul.u32 4, %s19
          %p1156 = scmp.lt.s32.totalorder %s1155, 3
          %s1157 = scalar_select %p1156, %s1155, 3
          %s1158 = smul.addr %s1157, 8
          %s1159 = scalar_lea.vmem %s2, %s1158
        $region71: #{netd_forward.5} parent=46 // pred_fallthru
          _
        // Predicated region
        $region72: #{netd_forward.5} parent=46 // pred_check
          %p1160 = pneg %p125
        $region73: #{netd_forward.5} parent=46 // pred_check_branch
          %1162 = sbr.rel (%p1160) target = $region75
        $region74: #{netd_forward.5} parent=46 // pred_region
          %p1163 = scmp.lt.s32.totalorder %s19, 0
          %s1164 = scalar_select %p1163, %s19, 0
          %s1165 = smul.addr %s1164, 8
          %s1166 = scalar_lea.vmem %s3, %s1165
        $region75: #{netd_forward.5} parent=46 // pred_fallthru
          _
      $region47: #{netd_forward.5} parent=5 // pred_fallthru
        _
      %p1167 = scmp.le.s32.totalorder 2, %s10
      // Predicated region
      $region76: #{netd_forward.5} parent=5 // pred_check
        %p1168 = pneg %p1167
      $region77: #{netd_forward.5} parent=5 // pred_check_branch
        %1170 = sbr.rel (%p1168) target = $region79
      $region78: #{netd_forward.5} parent=5 // pred_region
        %s1171 = ssub.s32 %s10, 2
      $region79: #{netd_forward.5} parent=5 // pred_fallthru
        _
    $region6: #{netd_forward.5} parent=1 // loop_footer
      %s14 = sadd.s32 1, %s10
    $region7: #{netd_forward.5} parent=1 // loop_footer_branch
      %9 = sbr.rel target = $region3
    $region8: #{netd_forward.5} parent=1 // loop_exit
      _

</llo_original>
